<compile_context>
chip_gen: v6e
topology: v6e:2x2x1
jax: 0.10.0
libtpu: 0.0.40
codegen_flags: <defaults>
</compile_context>

<pallas_src>
import functools

import jax
import jax.numpy as jnp
from jax.experimental import pallas as pl
from jax.experimental.pallas import tpu as pltpu

NEG_SLOPE = 0.01   # nn.LeakyReLU default
BN_EPS = 1e-5      # nn.BatchNorm2d default


def _rup(x, m):
    return (x + m - 1) // m * m


def _vmem_limit_bytes():
    # Per-generation scoped-VMEM budget: ~3/4 of physical, capped at 100 MiB.
    # v5e/v6e (128 MiB) -> 96 MiB, v7x (64 MiB) -> 48 MiB.
    try:
        cap = int(pltpu.get_tpu_info().vmem_capacity_bytes)
    except Exception:            # conservative fallback, safe on every generation
        cap = 64 * 1024 * 1024
    return int(min(100 * 1024 * 1024, cap * 3 // 4))


# ---------------------------------------------------------------------------
# Fused kernel. One grid step = one batch image, channels-first, flattened
# padded spatial axis P = (H+2)*(W+2).
#   x_ref   : (Cin_p, Px)      bf16  padded image; guard = 2 extra zero rows/side
#   w1_ref  : (C1_p, 9*Cin_p)  bf16  conv1 weights, stacked-tap layout
#   w2_ref  : (C2_p, 9*C1_p)   bf16  conv2 weights, stacked-tap layout
#   s*/b*   : (C, 1)           f32   folded BN scale / (conv-bias + BN) shift
#   mask_ref: (1, P)           f32   1 on the HxW interior, 0 on the pad ring
#   o_ref   : (C2_p, H*Wp)     f32   padded rows 1..H of the conv-2 output
#   y1_ref  : (C1_p, P+2*Gy)   bf16  scratch: layer-1 activation (+ zero guards)
#   k_ref   : (9*Cmax, P)      bf16  scratch: stacked-K matmul operand
# ---------------------------------------------------------------------------
def _fused_convblock_kernel(x_ref, w1_ref, w2_ref, s1_ref, b1_ref, s2_ref,
                            b2_ref, mask_ref, o_ref, y1_ref, k_ref, *,
                            Wp, P, Gx, Gy, cin_p, c1_p, out_lanes):

    def stack_taps(src_ref, base, c):
        # Copy the 9 shifted windows once; tap t occupies rows [t*c, (t+1)*c).
        # Sublane offsets are multiples of 16 (bf16 tile aligned).
        for t in range(9):
            kh, kw = divmod(t, 3)
            d = (kh - 1) * Wp + (kw - 1)                       # flat tap offset
            k_ref[t * c:(t + 1) * c, :] = src_ref[:, base + d:base + d + P]

    # ---- layer 1: ONE MXU matmul with K = 9*Cin_p, f32 epilogue -------------
    stack_taps(x_ref, Gx, cin_p)
    y1 = jnp.dot(w1_ref[...], k_ref[:9 * cin_p, :],
                 preferred_element_type=jnp.float32)
    y1 = y1 * s1_ref[...] + b1_ref[...]
    y1 = jnp.where(y1 >= 0.0, y1, NEG_SLOPE * y1)
    y1 = y1 * mask_ref[...]          # zero the pad ring -> becomes conv-2 padding

    # Zero only the guard strips (not the whole scratch).  Interior store starts
    # on a 128-lane boundary (Gy is lane-aligned).
    y1_ref[:, :Gy] = jnp.zeros((c1_p, Gy), y1_ref.dtype)
    y1_ref[:, Gy + P:] = jnp.zeros((c1_p, Gy), y1_ref.dtype)
    y1_ref[:, Gy:Gy + P] = y1.astype(y1_ref.dtype)   # bf16 intermediate stays in VMEM

    # ---- layer 2 straight out of VMEM (intermediate never touches HBM) ------
    stack_taps(y1_ref, Gy, c1_p)
    y2 = jnp.dot(w2_ref[...], k_ref[:9 * c1_p, :],
                 preferred_element_type=jnp.float32)
    y2 = y2 * s2_ref[...] + b2_ref[...]
    y2 = jnp.where(y2 >= 0.0, y2, NEG_SLOPE * y2)

    # keep padded rows 1..H (contiguous lanes); wrapper trims the W-pad columns
    o_ref[...] = y2[:, Wp:Wp + out_lanes].astype(o_ref.dtype)


# ---------------------------------------------------------------------------
# convBlock forward (NCHW in, NCHW out — matches the PyTorch module)
# ---------------------------------------------------------------------------
def conv_block_forward(x_nchw, params):
    N, Cin, H, W = x_nchw.shape
    Hp, Wp = H + 2, W + 2
    P = Hp * Wp                  # flattened (conv-padded) spatial extent
    Gx = 2 * Wp                  # input flat guard = the 2 extra zero rows/side
    Px = (H + 6) * Wp            # rows: 2 guard + 1 conv-pad + H + 1 conv-pad + 2 guard
    Gy = _rup(Wp + 1, 128)       # lane-aligned guard for the VMEM y1 scratch

    C1 = params["conv1_w"].shape[0]
    C2 = params["conv2_w"].shape[0]
    Cin_p = _rup(Cin, 16)        # bf16 packs 16 rows per sublane tile
    C1_p = _rup(C1, 16)
    C2_p = _rup(C2, 8)           # f32 output sublane granularity
    Cmax = max(Cin_p, C1_p)

    # ONE wrapper-side pass over the activation: bf16 cast + channel pad +
    # conv zero-pad + guard rows all in one jnp.pad; reshape is free (row-major).
    x_ext = jnp.pad(x_nchw.astype(jnp.bfloat16),
                    ((0, 0), (0, Cin_p - Cin), (3, 3), (1, 1))
                    ).reshape(N, Cin_p, Px)

    # Stacked-tap weights: OIHW -> (O, 9*I); column = (kh*3+kw)*I + i, matching
    # k_ref's row layout.
    def taps(w, o_pad, i_pad):
        o, i = w.shape[:2]
        w = jnp.pad(w, ((0, o_pad - o), (0, i_pad - i), (0, 0), (0, 0)))
        return jnp.transpose(w, (0, 2, 3, 1)).reshape(o_pad, 9 * i_pad).astype(jnp.bfloat16)

    w1_t = taps(params["conv1_w"], C1_p, Cin_p)
    w2_t = taps(params["conv2_w"], C2_p, C1_p)

    # fold conv bias + BatchNorm (eval mode, running stats) into scale/shift
    def fold(b, gamma, beta, mean, var, c_pad):
        scale = gamma / jnp.sqrt(var + BN_EPS)
        shift = (b - mean) * scale + beta
        scale = jnp.pad(scale, (0, c_pad - scale.shape[0]))
        shift = jnp.pad(shift, (0, c_pad - shift.shape[0]))
        return (scale.reshape(c_pad, 1).astype(jnp.float32),
                shift.reshape(c_pad, 1).astype(jnp.float32))

    s1, b1 = fold(params["conv1_b"], params["bn1_gamma"], params["bn1_beta"],
                  params["bn1_mean"], params["bn1_var"], C1_p)
    s2, b2 = fold(params["conv2_b"], params["bn2_gamma"], params["bn2_beta"],
                  params["bn2_mean"], params["bn2_var"], C2_p)

    # interior mask over the padded grid (1 inside HxW, 0 on the conv pad ring).
    # Kept as a tiny constant-index input (the pipeline fetches it once); an
    # in-kernel iota version needs vector int div/mod, which is riskier to lower.
    hh = (jnp.arange(Hp) >= 1) & (jnp.arange(Hp) <= H)
    ww = (jnp.arange(Wp) >= 1) & (jnp.arange(Wp) <= W)
    mask = (hh[:, None] & ww[None, :]).astype(jnp.float32).reshape(1, P)

    out_lanes = H * Wp
    kernel = functools.partial(_fused_convblock_kernel, Wp=Wp, P=P, Gx=Gx, Gy=Gy,
                               cin_p=Cin_p, c1_p=C1_p, out_lanes=out_lanes)

    const2 = lambda n: (0, 0)

    out = pl.pallas_call(
        kernel,
        out_shape=jax.ShapeDtypeStruct((N, C2_p, out_lanes), jnp.float32),
        grid_spec=pltpu.PrefetchScalarGridSpec(
            num_scalar_prefetch=0,
            grid=(N,),
            in_specs=[
                pl.BlockSpec((None, Cin_p, Px), lambda n: (n, 0, 0)),   # activation
                pl.BlockSpec((C1_p, 9 * Cin_p), const2),                # conv1 W (stacked taps)
                pl.BlockSpec((C2_p, 9 * C1_p), const2),                 # conv2 W (stacked taps)
                pl.BlockSpec((C1_p, 1), const2),                        # scale1
                pl.BlockSpec((C1_p, 1), const2),                        # shift1
                pl.BlockSpec((C2_p, 1), const2),                        # scale2
                pl.BlockSpec((C2_p, 1), const2),                        # shift2
                pl.BlockSpec((1, P), const2),                           # interior mask
            ],
            out_specs=pl.BlockSpec((None, C2_p, out_lanes), lambda n: (n, 0, 0)),
            scratch_shapes=[pltpu.VMEM((C1_p, P + 2 * Gy), jnp.bfloat16),  # y1
                            pltpu.VMEM((9 * Cmax, P), jnp.bfloat16)],      # stacked K
        ),
        compiler_params=pltpu.CompilerParams(
            dimension_semantics=("parallel",),       # images shard across TCs (v7x)
            vmem_limit_bytes=_vmem_limit_bytes(),
        ),
    )(x_ext, w1_t, w2_t, s1, b1, s2, b2, mask)

    # TODO(synk): nn.Dropout2d(p=0.2) is identity in eval mode; training-mode
    # per-channel dropout is not reproduced here.
    # TODO(synk): for large images / channel counts (e.g. 256ch @ 128x128) add a
    # spatial row-strip grid axis (2-row halo) so blocks fit v7x's 64 MiB VMEM
    # and give pipeline depth; one whole image per step is right at these sizes.

    # drop padded output channels and the W-pad columns (single small slice);
    # result is already NCHW — no transposes anywhere.
    return out.reshape(N, C2_p, H, Wp)[:, :C2, :, 1:1 + W]


# ---------------------------------------------------------------------------
# Plain-JAX reference (correctness check only)
# ---------------------------------------------------------------------------
def _reference(x_nchw, params):
    x = x_nchw
    for layer in ("1", "2"):
        w = params[f"conv{layer}_w"]
        b = params[f"conv{layer}_b"]
        x = jax.lax.conv_general_dilated(
            x, w, window_strides=(1, 1), padding=((1, 1), (1, 1)),
            dimension_numbers=("NCHW", "OIHW", "NCHW"))
        x = x + b[None, :, None, None]
        scale = params[f"bn{layer}_gamma"] / jnp.sqrt(params[f"bn{layer}_var"] + BN_EPS)
        x = (x - params[f"bn{layer}_mean"][None, :, None, None]) * scale[None, :, None, None] \
            + params[f"bn{layer}_beta"][None, :, None, None]
        x = jnp.where(x >= 0, x, NEG_SLOPE * x)
    return x


if __name__ == "__main__":
    key = jax.random.PRNGKey(0)
    N, Cin, H, W, Cout = 2, 4, 16, 16, 8
    ks = jax.random.split(key, 16)

    x = jax.random.normal(ks[0], (N, Cin, H, W), jnp.float32)

    params = {
        # conv1: ch_in -> ch_out
        "conv1_w": 0.1 * jax.random.normal(ks[1], (Cout, Cin, 3, 3), jnp.float32),
        "conv1_b": 0.1 * jax.random.normal(ks[2], (Cout,), jnp.float32),
        "bn1_gamma": 1.0 + 0.1 * jax.random.normal(ks[3], (Cout,), jnp.float32),
        "bn1_beta": 0.1 * jax.random.normal(ks[4], (Cout,), jnp.float32),
        "bn1_mean": 0.1 * jax.random.normal(ks[5], (Cout,), jnp.float32),
        "bn1_var": jax.random.uniform(ks[6], (Cout,), jnp.float32, 0.5, 1.5),
        # conv2: ch_out -> ch_out
        "conv2_w": 0.1 * jax.random.normal(ks[7], (Cout, Cout, 3, 3), jnp.float32),
        "conv2_b": 0.1 * jax.random.normal(ks[8], (Cout,), jnp.float32),
        "bn2_gamma": 1.0 + 0.1 * jax.random.normal(ks[9], (Cout,), jnp.float32),
        "bn2_beta": 0.1 * jax.random.normal(ks[10], (Cout,), jnp.float32),
        "bn2_mean": 0.1 * jax.random.normal(ks[11], (Cout,), jnp.float32),
        "bn2_var": jax.random.uniform(ks[12], (Cout,), jnp.float32, 0.5, 1.5),
    }

    out = jax.jit(conv_block_forward)(x, params)
    out = jax.block_until_ready(out)

    ref = _reference(x, params)
    assert out.shape == (N, Cout, H, W), out.shape
    max_err = float(jnp.max(jnp.abs(out - ref)))
    # bf16 matmul operands + bf16 layer-1 intermediate (f32 accumulation) ->
    # loosened tolerance vs the f32 reference.
    assert jnp.allclose(out, ref, atol=5e-2, rtol=5e-2), max_err

    print("KERNEL_OK")
</pallas_src>

<mosaic_0001>
module attributes {stable_mosaic.version = 11 : i64} {
  func.func @_fused_convblock_kernel(%arg0: i32, %arg1: memref<1x16x396xbf16, #tpu.memory_space<vmem>>, %arg2: memref<16x144xbf16, #tpu.memory_space<vmem>>, %arg3: memref<8x144xbf16, #tpu.memory_space<vmem>>, %arg4: memref<16x1xf32, #tpu.memory_space<vmem>>, %arg5: memref<16x1xf32, #tpu.memory_space<vmem>>, %arg6: memref<8x1xf32, #tpu.memory_space<vmem>>, %arg7: memref<8x1xf32, #tpu.memory_space<vmem>>, %arg8: memref<1x324xf32, #tpu.memory_space<vmem>>, %arg9: memref<1x8x288xf32, #tpu.memory_space<vmem>>, %arg10: memref<16x580xbf16, #tpu.memory_space<vmem>>, %arg11: memref<144x324xbf16, #tpu.memory_space<vmem>>) attributes {dimension_semantics = [#tpu.dimension_semantics<parallel>], iteration_bounds = array<i64: 2>, scalar_prefetch = 0 : i64, scratch_operands = 2 : i64, tpu.core_type = #tpu.core_type<tc>, window_params = [{transform_indices = @transform_0, window_bounds = array<i64: 1, 16, 396>}, {pipeline_mode = #tpu.pipeline_mode<synchronous>, transform_indices = @transform_1, window_bounds = array<i64: 16, 144>}, {pipeline_mode = #tpu.pipeline_mode<synchronous>, transform_indices = @transform_2, window_bounds = array<i64: 8, 144>}, {pipeline_mode = #tpu.pipeline_mode<synchronous>, transform_indices = @transform_3, window_bounds = array<i64: 16, 1>}, {pipeline_mode = #tpu.pipeline_mode<synchronous>, transform_indices = @transform_4, window_bounds = array<i64: 16, 1>}, {pipeline_mode = #tpu.pipeline_mode<synchronous>, transform_indices = @transform_5, window_bounds = array<i64: 8, 1>}, {pipeline_mode = #tpu.pipeline_mode<synchronous>, transform_indices = @transform_6, window_bounds = array<i64: 8, 1>}, {pipeline_mode = #tpu.pipeline_mode<synchronous>, transform_indices = @transform_7, window_bounds = array<i64: 1, 324>}, {transform_indices = @transform_8, window_bounds = array<i64: 1, 8, 288>}]} {
    %c0 = arith.constant 0 : index
    %c0_0 = arith.constant 0 : index
    %c17 = arith.constant 17 : index
    %0 = vector.load %arg1[%c0, %c0_0, %c17] : memref<1x16x396xbf16, #tpu.memory_space<vmem>>, vector<1x16x324xbf16>
    %1 = vector.shape_cast %0 : vector<1x16x324xbf16> to vector<16x324xbf16>
    %c0_1 = arith.constant 0 : index
    %c0_2 = arith.constant 0 : index
    %2 = vector.load %arg11[%c0_1, %c0_2] : memref<144x324xbf16, #tpu.memory_space<vmem>>, vector<16x324xbf16>
    tpu.vector_store %arg11[%c0_1, %c0_2], %1 {strides = array<i32>} : memref<144x324xbf16, #tpu.memory_space<vmem>>, vector<16x324xbf16>,
    %c0_3 = arith.constant 0 : index
    %c0_4 = arith.constant 0 : index
    %c18 = arith.constant 18 : index
    %3 = vector.load %arg1[%c0_3, %c0_4, %c18] : memref<1x16x396xbf16, #tpu.memory_space<vmem>>, vector<1x16x324xbf16>
    %4 = vector.shape_cast %3 : vector<1x16x324xbf16> to vector<16x324xbf16>
    %c16 = arith.constant 16 : index
    %c0_5 = arith.constant 0 : index
    %5 = vector.load %arg11[%c16, %c0_5] : memref<144x324xbf16, #tpu.memory_space<vmem>>, vector<16x324xbf16>
    tpu.vector_store %arg11[%c16, %c0_5], %4 {strides = array<i32>} : memref<144x324xbf16, #tpu.memory_space<vmem>>, vector<16x324xbf16>,
    %c0_6 = arith.constant 0 : index
    %c0_7 = arith.constant 0 : index
    %c19 = arith.constant 19 : index
    %6 = vector.load %arg1[%c0_6, %c0_7, %c19] : memref<1x16x396xbf16, #tpu.memory_space<vmem>>, vector<1x16x324xbf16>
    %7 = vector.shape_cast %6 : vector<1x16x324xbf16> to vector<16x324xbf16>
    %c32 = arith.constant 32 : index
    %c0_8 = arith.constant 0 : index
    %8 = vector.load %arg11[%c32, %c0_8] : memref<144x324xbf16, #tpu.memory_space<vmem>>, vector<16x324xbf16>
    tpu.vector_store %arg11[%c32, %c0_8], %7 {strides = array<i32>} : memref<144x324xbf16, #tpu.memory_space<vmem>>, vector<16x324xbf16>,
    %c0_9 = arith.constant 0 : index
    %c0_10 = arith.constant 0 : index
    %c35 = arith.constant 35 : index
    %9 = vector.load %arg1[%c0_9, %c0_10, %c35] : memref<1x16x396xbf16, #tpu.memory_space<vmem>>, vector<1x16x324xbf16>
    %10 = vector.shape_cast %9 : vector<1x16x324xbf16> to vector<16x324xbf16>
    %c48 = arith.constant 48 : index
    %c0_11 = arith.constant 0 : index
    %11 = vector.load %arg11[%c48, %c0_11] : memref<144x324xbf16, #tpu.memory_space<vmem>>, vector<16x324xbf16>
    tpu.vector_store %arg11[%c48, %c0_11], %10 {strides = array<i32>} : memref<144x324xbf16, #tpu.memory_space<vmem>>, vector<16x324xbf16>,
    %c0_12 = arith.constant 0 : index
    %c0_13 = arith.constant 0 : index
    %c36 = arith.constant 36 : index
    %12 = vector.load %arg1[%c0_12, %c0_13, %c36] : memref<1x16x396xbf16, #tpu.memory_space<vmem>>, vector<1x16x324xbf16>
    %13 = vector.shape_cast %12 : vector<1x16x324xbf16> to vector<16x324xbf16>
    %c64 = arith.constant 64 : index
    %c0_14 = arith.constant 0 : index
    %14 = vector.load %arg11[%c64, %c0_14] : memref<144x324xbf16, #tpu.memory_space<vmem>>, vector<16x324xbf16>
    tpu.vector_store %arg11[%c64, %c0_14], %13 {strides = array<i32>} : memref<144x324xbf16, #tpu.memory_space<vmem>>, vector<16x324xbf16>,
    %c0_15 = arith.constant 0 : index
    %c0_16 = arith.constant 0 : index
    %c37 = arith.constant 37 : index
    %15 = vector.load %arg1[%c0_15, %c0_16, %c37] : memref<1x16x396xbf16, #tpu.memory_space<vmem>>, vector<1x16x324xbf16>
    %16 = vector.shape_cast %15 : vector<1x16x324xbf16> to vector<16x324xbf16>
    %c80 = arith.constant 80 : index
    %c0_17 = arith.constant 0 : index
    %17 = vector.load %arg11[%c80, %c0_17] : memref<144x324xbf16, #tpu.memory_space<vmem>>, vector<16x324xbf16>
    tpu.vector_store %arg11[%c80, %c0_17], %16 {strides = array<i32>} : memref<144x324xbf16, #tpu.memory_space<vmem>>, vector<16x324xbf16>,
    %c0_18 = arith.constant 0 : index
    %c0_19 = arith.constant 0 : index
    %c53 = arith.constant 53 : index
    %18 = vector.load %arg1[%c0_18, %c0_19, %c53] : memref<1x16x396xbf16, #tpu.memory_space<vmem>>, vector<1x16x324xbf16>
    %19 = vector.shape_cast %18 : vector<1x16x324xbf16> to vector<16x324xbf16>
    %c96 = arith.constant 96 : index
    %c0_20 = arith.constant 0 : index
    %20 = vector.load %arg11[%c96, %c0_20] : memref<144x324xbf16, #tpu.memory_space<vmem>>, vector<16x324xbf16>
    tpu.vector_store %arg11[%c96, %c0_20], %19 {strides = array<i32>} : memref<144x324xbf16, #tpu.memory_space<vmem>>, vector<16x324xbf16>,
    %c0_21 = arith.constant 0 : index
    %c0_22 = arith.constant 0 : index
    %c54 = arith.constant 54 : index
    %21 = vector.load %arg1[%c0_21, %c0_22, %c54] : memref<1x16x396xbf16, #tpu.memory_space<vmem>>, vector<1x16x324xbf16>
    %22 = vector.shape_cast %21 : vector<1x16x324xbf16> to vector<16x324xbf16>
    %c112 = arith.constant 112 : index
    %c0_23 = arith.constant 0 : index
    %23 = vector.load %arg11[%c112, %c0_23] : memref<144x324xbf16, #tpu.memory_space<vmem>>, vector<16x324xbf16>
    tpu.vector_store %arg11[%c112, %c0_23], %22 {strides = array<i32>} : memref<144x324xbf16, #tpu.memory_space<vmem>>, vector<16x324xbf16>,
    %c0_24 = arith.constant 0 : index
    %c0_25 = arith.constant 0 : index
    %c55 = arith.constant 55 : index
    %24 = vector.load %arg1[%c0_24, %c0_25, %c55] : memref<1x16x396xbf16, #tpu.memory_space<vmem>>, vector<1x16x324xbf16>
    %25 = vector.shape_cast %24 : vector<1x16x324xbf16> to vector<16x324xbf16>
    %c128 = arith.constant 128 : index
    %c0_26 = arith.constant 0 : index
    %26 = vector.load %arg11[%c128, %c0_26] : memref<144x324xbf16, #tpu.memory_space<vmem>>, vector<16x324xbf16>
    tpu.vector_store %arg11[%c128, %c0_26], %25 {strides = array<i32>} : memref<144x324xbf16, #tpu.memory_space<vmem>>, vector<16x324xbf16>,
    %c0_27 = arith.constant 0 : index
    %c0_28 = arith.constant 0 : index
    %27 = vector.load %arg2[%c0_27, %c0_28] : memref<16x144xbf16, #tpu.memory_space<vmem>>, vector<16x144xbf16>
    %c0_29 = arith.constant 0 : index
    %c0_30 = arith.constant 0 : index
    %28 = vector.load %arg11[%c0_29, %c0_30] : memref<144x324xbf16, #tpu.memory_space<vmem>>, vector<144x324xbf16>
    %cst = arith.constant dense<0.000000e+00> : vector<16x324xf32>
    %29 = tpu.matmul %27, %28, %cst {dimension_numbers = #tpu.dot_dimension_numbers<[1], [0], [0], [1], [0, 0, 1, 1], [], []>} : vector<16x144xbf16>, vector<144x324xbf16>, vector<16x324xf32> -> vector<16x324xf32>
    %c0_31 = arith.constant 0 : index
    %c0_32 = arith.constant 0 : index
    %30 = vector.load %arg4[%c0_31, %c0_32] : memref<16x1xf32, #tpu.memory_space<vmem>>, vector<16x1xf32>
    %31 = vector.broadcast %30 : vector<16x1xf32> to vector<16x324xf32>
    %32 = arith.mulf %29, %31 : vector<16x324xf32>
    %c0_33 = arith.constant 0 : index
    %c0_34 = arith.constant 0 : index
    %33 = vector.load %arg5[%c0_33, %c0_34] : memref<16x1xf32, #tpu.memory_space<vmem>>, vector<16x1xf32>
    %34 = vector.broadcast %33 : vector<16x1xf32> to vector<16x324xf32>
    %35 = arith.addf %32, %34 : vector<16x324xf32>
    %cst_35 = arith.constant 0.000000e+00 : f32
    %36 = vector.broadcast %cst_35 : f32 to vector<16x324xf32>
    %37 = arith.cmpf oge, %35, %36 : vector<16x324xf32>
    %cst_36 = arith.constant 0.00999999977 : f32
    %38 = vector.broadcast %cst_36 : f32 to vector<16x324xf32>
    %39 = arith.mulf %38, %35 : vector<16x324xf32>
    %40 = arith.select %37, %35, %39 : vector<16x324xi1>, vector<16x324xf32>
    %c0_37 = arith.constant 0 : index
    %c0_38 = arith.constant 0 : index
    %41 = vector.load %arg8[%c0_37, %c0_38] : memref<1x324xf32, #tpu.memory_space<vmem>>, vector<1x324xf32>
    %42 = vector.broadcast %41 : vector<1x324xf32> to vector<16x324xf32>
    %43 = arith.mulf %40, %42 : vector<16x324xf32>
    %cst_39 = arith.constant 0.000000e+00 : bf16
    %44 = vector.broadcast %cst_39 : bf16 to vector<16x128xbf16>
    %c0_40 = arith.constant 0 : index
    %c0_41 = arith.constant 0 : index
    %45 = vector.load %arg10[%c0_40, %c0_41] : memref<16x580xbf16, #tpu.memory_space<vmem>>, vector<16x128xbf16>
    tpu.vector_store %arg10[%c0_40, %c0_41], %44 {strides = array<i32>} : memref<16x580xbf16, #tpu.memory_space<vmem>>, vector<16x128xbf16>,
    %cst_42 = arith.constant 0.000000e+00 : bf16
    %46 = vector.broadcast %cst_42 : bf16 to vector<16x128xbf16>
    %c0_43 = arith.constant 0 : index
    %c452 = arith.constant 452 : index
    %47 = vector.load %arg10[%c0_43, %c452] : memref<16x580xbf16, #tpu.memory_space<vmem>>, vector<16x128xbf16>
    tpu.vector_store %arg10[%c0_43, %c452], %46 {strides = array<i32>} : memref<16x580xbf16, #tpu.memory_space<vmem>>, vector<16x128xbf16>,
    %48 = arith.truncf %43 : vector<16x324xf32> to vector<16x324xbf16>
    %c0_44 = arith.constant 0 : index
    %c128_45 = arith.constant 128 : index
    %49 = vector.load %arg10[%c0_44, %c128_45] : memref<16x580xbf16, #tpu.memory_space<vmem>>, vector<16x324xbf16>
    tpu.vector_store %arg10[%c0_44, %c128_45], %48 {strides = array<i32>} : memref<16x580xbf16, #tpu.memory_space<vmem>>, vector<16x324xbf16>,
    %c0_46 = arith.constant 0 : index
    %c109 = arith.constant 109 : index
    %50 = vector.load %arg10[%c0_46, %c109] : memref<16x580xbf16, #tpu.memory_space<vmem>>, vector<16x324xbf16>
    %c0_47 = arith.constant 0 : index
    %c0_48 = arith.constant 0 : index
    %51 = vector.load %arg11[%c0_47, %c0_48] : memref<144x324xbf16, #tpu.memory_space<vmem>>, vector<16x324xbf16>
    tpu.vector_store %arg11[%c0_47, %c0_48], %50 {strides = array<i32>} : memref<144x324xbf16, #tpu.memory_space<vmem>>, vector<16x324xbf16>,
    %c0_49 = arith.constant 0 : index
    %c110 = arith.constant 110 : index
    %52 = vector.load %arg10[%c0_49, %c110] : memref<16x580xbf16, #tpu.memory_space<vmem>>, vector<16x324xbf16>
    %c16_50 = arith.constant 16 : index
    %c0_51 = arith.constant 0 : index
    %53 = vector.load %arg11[%c16_50, %c0_51] : memref<144x324xbf16, #tpu.memory_space<vmem>>, vector<16x324xbf16>
    tpu.vector_store %arg11[%c16_50, %c0_51], %52 {strides = array<i32>} : memref<144x324xbf16, #tpu.memory_space<vmem>>, vector<16x324xbf16>,
    %c0_52 = arith.constant 0 : index
    %c111 = arith.constant 111 : index
    %54 = vector.load %arg10[%c0_52, %c111] : memref<16x580xbf16, #tpu.memory_space<vmem>>, vector<16x324xbf16>
    %c32_53 = arith.constant 32 : index
    %c0_54 = arith.constant 0 : index
    %55 = vector.load %arg11[%c32_53, %c0_54] : memref<144x324xbf16, #tpu.memory_space<vmem>>, vector<16x324xbf16>
    tpu.vector_store %arg11[%c32_53, %c0_54], %54 {strides = array<i32>} : memref<144x324xbf16, #tpu.memory_space<vmem>>, vector<16x324xbf16>,
    %c0_55 = arith.constant 0 : index
    %c127 = arith.constant 127 : index
    %56 = vector.load %arg10[%c0_55, %c127] : memref<16x580xbf16, #tpu.memory_space<vmem>>, vector<16x324xbf16>
    %c48_56 = arith.constant 48 : index
    %c0_57 = arith.constant 0 : index
    %57 = vector.load %arg11[%c48_56, %c0_57] : memref<144x324xbf16, #tpu.memory_space<vmem>>, vector<16x324xbf16>
    tpu.vector_store %arg11[%c48_56, %c0_57], %56 {strides = array<i32>} : memref<144x324xbf16, #tpu.memory_space<vmem>>, vector<16x324xbf16>,
    %c0_58 = arith.constant 0 : index
    %c128_59 = arith.constant 128 : index
    %58 = vector.load %arg10[%c0_58, %c128_59] : memref<16x580xbf16, #tpu.memory_space<vmem>>, vector<16x324xbf16>
    %c64_60 = arith.constant 64 : index
    %c0_61 = arith.constant 0 : index
    %59 = vector.load %arg11[%c64_60, %c0_61] : memref<144x324xbf16, #tpu.memory_space<vmem>>, vector<16x324xbf16>
    tpu.vector_store %arg11[%c64_60, %c0_61], %58 {strides = array<i32>} : memref<144x324xbf16, #tpu.memory_space<vmem>>, vector<16x324xbf16>,
    %c0_62 = arith.constant 0 : index
    %c129 = arith.constant 129 : index
    %60 = vector.load %arg10[%c0_62, %c129] : memref<16x580xbf16, #tpu.memory_space<vmem>>, vector<16x324xbf16>
    %c80_63 = arith.constant 80 : index
    %c0_64 = arith.constant 0 : index
    %61 = vector.load %arg11[%c80_63, %c0_64] : memref<144x324xbf16, #tpu.memory_space<vmem>>, vector<16x324xbf16>
    tpu.vector_store %arg11[%c80_63, %c0_64], %60 {strides = array<i32>} : memref<144x324xbf16, #tpu.memory_space<vmem>>, vector<16x324xbf16>,
    %c0_65 = arith.constant 0 : index
    %c145 = arith.constant 145 : index
    %62 = vector.load %arg10[%c0_65, %c145] : memref<16x580xbf16, #tpu.memory_space<vmem>>, vector<16x324xbf16>
    %c96_66 = arith.constant 96 : index
    %c0_67 = arith.constant 0 : index
    %63 = vector.load %arg11[%c96_66, %c0_67] : memref<144x324xbf16, #tpu.memory_space<vmem>>, vector<16x324xbf16>
    tpu.vector_store %arg11[%c96_66, %c0_67], %62 {strides = array<i32>} : memref<144x324xbf16, #tpu.memory_space<vmem>>, vector<16x324xbf16>,
    %c0_68 = arith.constant 0 : index
    %c146 = arith.constant 146 : index
    %64 = vector.load %arg10[%c0_68, %c146] : memref<16x580xbf16, #tpu.memory_space<vmem>>, vector<16x324xbf16>
    %c112_69 = arith.constant 112 : index
    %c0_70 = arith.constant 0 : index
    %65 = vector.load %arg11[%c112_69, %c0_70] : memref<144x324xbf16, #tpu.memory_space<vmem>>, vector<16x324xbf16>
    tpu.vector_store %arg11[%c112_69, %c0_70], %64 {strides = array<i32>} : memref<144x324xbf16, #tpu.memory_space<vmem>>, vector<16x324xbf16>,
    %c0_71 = arith.constant 0 : index
    %c147 = arith.constant 147 : index
    %66 = vector.load %arg10[%c0_71, %c147] : memref<16x580xbf16, #tpu.memory_space<vmem>>, vector<16x324xbf16>
    %c128_72 = arith.constant 128 : index
    %c0_73 = arith.constant 0 : index
    %67 = vector.load %arg11[%c128_72, %c0_73] : memref<144x324xbf16, #tpu.memory_space<vmem>>, vector<16x324xbf16>
    tpu.vector_store %arg11[%c128_72, %c0_73], %66 {strides = array<i32>} : memref<144x324xbf16, #tpu.memory_space<vmem>>, vector<16x324xbf16>,
    %c0_74 = arith.constant 0 : index
    %c0_75 = arith.constant 0 : index
    %68 = vector.load %arg3[%c0_74, %c0_75] : memref<8x144xbf16, #tpu.memory_space<vmem>>, vector<8x144xbf16>
    %c0_76 = arith.constant 0 : index
    %c0_77 = arith.constant 0 : index
    %69 = vector.load %arg11[%c0_76, %c0_77] : memref<144x324xbf16, #tpu.memory_space<vmem>>, vector<144x324xbf16>
    %cst_78 = arith.constant dense<0.000000e+00> : vector<8x324xf32>
    %70 = tpu.matmul %68, %69, %cst_78 {dimension_numbers = #tpu.dot_dimension_numbers<[1], [0], [0], [1], [0, 0, 1, 1], [], []>} : vector<8x144xbf16>, vector<144x324xbf16>, vector<8x324xf32> -> vector<8x324xf32>
    %c0_79 = arith.constant 0 : index
    %c0_80 = arith.constant 0 : index
    %71 = vector.load %arg6[%c0_79, %c0_80] : memref<8x1xf32, #tpu.memory_space<vmem>>, vector<8x1xf32>
    %72 = vector.broadcast %71 : vector<8x1xf32> to vector<8x324xf32>
    %73 = arith.mulf %70, %72 : vector<8x324xf32>
    %c0_81 = arith.constant 0 : index
    %c0_82 = arith.constant 0 : index
    %74 = vector.load %arg7[%c0_81, %c0_82] : memref<8x1xf32, #tpu.memory_space<vmem>>, vector<8x1xf32>
    %75 = vector.broadcast %74 : vector<8x1xf32> to vector<8x324xf32>
    %76 = arith.addf %73, %75 : vector<8x324xf32>
    %cst_83 = arith.constant 0.000000e+00 : f32
    %77 = vector.broadcast %cst_83 : f32 to vector<8x324xf32>
    %78 = arith.cmpf oge, %76, %77 : vector<8x324xf32>
    %cst_84 = arith.constant 0.00999999977 : f32
    %79 = vector.broadcast %cst_84 : f32 to vector<8x324xf32>
    %80 = arith.mulf %79, %76 : vector<8x324xf32>
    %81 = arith.select %78, %76, %80 : vector<8x324xi1>, vector<8x324xf32>
    %82 = vector.extract_strided_slice %81 {offsets = [0, 18], sizes = [8, 288], strides = [1, 1]} : vector<8x324xf32> to vector<8x288xf32>
    %c0_85 = arith.constant 0 : index
    %c0_86 = arith.constant 0 : index
    %c0_87 = arith.constant 0 : index
    %83 = vector.load %arg9[%c0_85, %c0_86, %c0_87] : memref<1x8x288xf32, #tpu.memory_space<vmem>>, vector<1x8x288xf32>
    %84 = vector.shape_cast %83 : vector<1x8x288xf32> to vector<8x288xf32>
    %85 = vector.shape_cast %82 : vector<8x288xf32> to vector<1x8x288xf32>
    tpu.vector_store %arg9[%c0_85, %c0_86, %c0_87], %85 {strides = array<i32>} : memref<1x8x288xf32, #tpu.memory_space<vmem>>, vector<1x8x288xf32>,
    return
  }
  func.func @transform_0(%arg0: i32) -> (i32, i32, i32) {
    %c0_i32 = arith.constant 0 : i32
    %c0_i32_0 = arith.constant 0 : i32
    %c0_i32_1 = arith.constant 0 : i32
    return %arg0, %c0_i32, %c0_i32_0 : i32, i32, i32
  }
  func.func @transform_1(%arg0: i32) -> (i32, i32) {
    %c0_i32 = arith.constant 0 : i32
    %c0_i32_0 = arith.constant 0 : i32
    %c0_i32_1 = arith.constant 0 : i32
    return %c0_i32, %c0_i32_0 : i32, i32
  }
  func.func @transform_2(%arg0: i32) -> (i32, i32) {
    %c0_i32 = arith.constant 0 : i32
    %c0_i32_0 = arith.constant 0 : i32
    %c0_i32_1 = arith.constant 0 : i32
    return %c0_i32, %c0_i32_0 : i32, i32
  }
  func.func @transform_3(%arg0: i32) -> (i32, i32) {
    %c0_i32 = arith.constant 0 : i32
    %c0_i32_0 = arith.constant 0 : i32
    %c0_i32_1 = arith.constant 0 : i32
    return %c0_i32, %c0_i32_0 : i32, i32
  }
  func.func @transform_4(%arg0: i32) -> (i32, i32) {
    %c0_i32 = arith.constant 0 : i32
    %c0_i32_0 = arith.constant 0 : i32
    %c0_i32_1 = arith.constant 0 : i32
    return %c0_i32, %c0_i32_0 : i32, i32
  }
  func.func @transform_5(%arg0: i32) -> (i32, i32) {
    %c0_i32 = arith.constant 0 : i32
    %c0_i32_0 = arith.constant 0 : i32
    %c0_i32_1 = arith.constant 0 : i32
    return %c0_i32, %c0_i32_0 : i32, i32
  }
  func.func @transform_6(%arg0: i32) -> (i32, i32) {
    %c0_i32 = arith.constant 0 : i32
    %c0_i32_0 = arith.constant 0 : i32
    %c0_i32_1 = arith.constant 0 : i32
    return %c0_i32, %c0_i32_0 : i32, i32
  }
  func.func @transform_7(%arg0: i32) -> (i32, i32) {
    %c0_i32 = arith.constant 0 : i32
    %c0_i32_0 = arith.constant 0 : i32
    %c0_i32_1 = arith.constant 0 : i32
    return %c0_i32, %c0_i32_0 : i32, i32
  }
  func.func @transform_8(%arg0: i32) -> (i32, i32, i32) {
    %c0_i32 = arith.constant 0 : i32
    %c0_i32_0 = arith.constant 0 : i32
    %c0_i32_1 = arith.constant 0 : i32
    return %arg0, %c0_i32, %c0_i32_0 : i32, i32, i32
  }
}

</mosaic_0001>

<llo_original>
// kernel: conv_block_forward.1
$region0: #{conv_block_forward.1}
  #allocation0 [shape = 'u32[]', space=smem, size = 0x4, offset = 0x4, fixed_abs, tag = 'smem constant byte address 0x4 - core index']
  #allocation1 [shape = 'u32[144,128]{1,0:T(1,128)}', space=vmem, size = 0x12000, scoped, tag = 'internal scratch']
  #allocation2 [shape = 'bf16[16,580]{1,0:T(8,128)(2,1)}', space=vmem, size = 0x5000, scoped, tag = 'scratch operand']
  #allocation3 [shape = 'bf16[144,324]{1,0:T(8,128)(2,1)}', space=vmem, size = 0x1b000, scoped, tag = 'scratch operand']
  %s0 = inlined_call_operand.vmem [shape: bf16[2,16,396], index: 0, kind: input, shape index: {}]
  %s1 = inlined_call_operand.vmem [shape: bf16[16,144], index: 1, kind: input, shape index: {}]
  %s2 = inlined_call_operand.vmem [shape: bf16[8,144], index: 2, kind: input, shape index: {}]
  %s3 = inlined_call_operand.vmem [shape: f32[16,1], index: 3, kind: input, shape index: {}]
  %s4 = inlined_call_operand.vmem [shape: f32[16,1], index: 4, kind: input, shape index: {}]
  %s5 = inlined_call_operand.vmem [shape: f32[8,1], index: 5, kind: input, shape index: {}]
  %s6 = inlined_call_operand.vmem [shape: f32[8,1], index: 6, kind: input, shape index: {}]
  %s7 = inlined_call_operand.vmem [shape: f32[1,324], index: 7, kind: input, shape index: {}]
  %s8 = inlined_call_operand.vmem [shape: f32[2,8,288], index: 8, kind: output, shape index: {}]
  %s9 = sld [smem:[#allocation0]]
  $region65: #{conv_block_forward.1} parent=0
    _
  %s11 = ssub.s32 1, %s9
  %s12 = scalar_select 0, %s11, %s9
  loop: start=0, step=1, limit=4
  $region2: #{conv_block_forward.1} parent=0 // loop_pre_header
    _
  $region3: #{conv_block_forward.1} parent=0 // loop_header
    %s14 = sphi 0, %s18
    %p15 = scmp.ge.s32.totalorder %s14, 4
    %s24 = sphi 0, %s26
    %s27 = sphi 0, %s24
    %s28 = sphi 0, %s27
    %s44 = sphi 0, %s28
    %s48 = sphi 0, %s48
    %s50 = sphi 0, %s48
    %s51 = sphi 0, %s50
    %s65 = sphi 0, %s51
    %s69 = sphi 0, %s69
    %s71 = sphi 0, %s69
    %s72 = sphi 0, %s71
    %s86 = sphi 0, %s72
    %s90 = sphi 0, %s90
    %s92 = sphi 0, %s90
    %s93 = sphi 0, %s92
    %s107 = sphi 0, %s93
    %s111 = sphi 0, %s111
    %s113 = sphi 0, %s111
    %s114 = sphi 0, %s113
    %s128 = sphi 0, %s114
    %s132 = sphi 0, %s132
    %s134 = sphi 0, %s132
    %s135 = sphi 0, %s134
    %s149 = sphi 0, %s135
    %s153 = sphi 0, %s153
    %s155 = sphi 0, %s153
    %s156 = sphi 0, %s155
    %s170 = sphi 0, %s156
    %s174 = sphi 0, %s174
    %s176 = sphi 0, %s174
    %s177 = sphi 0, %s176
    %s191 = sphi 0, %s177
    %s197 = sphi 0, %s199
    %s200 = sphi 0, %s197
    %s201 = sphi 0, %s200
    %s217 = sphi 0, %s201
  $region4: #{conv_block_forward.1} parent=0 // loop_header_branch
    %17 = sbr.rel (%p15) target = $region8
  $region5: #{conv_block_forward.1} parent=0 // loop_body
    %s19 = ssub.s32 %s14, 1
    %s20 = ssub.s32 %s14, 2
    %s21 = sadd.s32 %s14, 1
    %s22 = ssub.s32 %s14, %s21
    %p23 = scmp.eq.s32.totalorder %s22, 0
    %s25 = sadd.s32 %s24, 1
    %s26 = scalar_select %p23, %s24, %s25
    %p29 = pneg %p23
    %p30 = scmp.eq.s32.totalorder %s14, 1
    %p31 = por %p29, %p30
    %p32 = scmp.ne.s32.totalorder %s24, %s27
    %p33 = scmp.eq.s32.totalorder %s14, 0
    %p34 = por %p32, %p33
    %p35 = scmp.ne.s32.totalorder %s24, %s27
    %p36 = scmp.eq.s32.totalorder %s19, 1
    %p37 = por %p35, %p36
    %p38 = scmp.ne.s32.totalorder %s27, %s28
    %p39 = scmp.eq.s32.totalorder %s19, 0
    %p40 = por %p38, %p39
    %p41 = scmp.ne.s32.totalorder %s27, %s28
    %p42 = scmp.eq.s32.totalorder %s20, 1
    %p43 = por %p41, %p42
    %p45 = scmp.ne.s32.totalorder %s28, %s44
    %p46 = scmp.eq.s32.totalorder %s20, 0
    %p47 = por %p45, %p46
    %s49 = sadd.s32 %s48, 1
    %p52 = scmp.eq.s32.totalorder %s14, 1
    %p53 = scmp.ne.s32.totalorder %s48, %s50
    %p54 = scmp.eq.s32.totalorder %s14, 0
    %p55 = por %p53, %p54
    %p56 = scmp.ne.s32.totalorder %s48, %s50
    %p57 = scmp.eq.s32.totalorder %s19, 1
    %p58 = por %p56, %p57
    %p59 = scmp.ne.s32.totalorder %s50, %s51
    %p60 = scmp.eq.s32.totalorder %s19, 0
    %p61 = por %p59, %p60
    %p62 = scmp.ne.s32.totalorder %s50, %s51
    %p63 = scmp.eq.s32.totalorder %s20, 1
    %p64 = por %p62, %p63
    %p66 = scmp.ne.s32.totalorder %s51, %s65
    %p67 = scmp.eq.s32.totalorder %s20, 0
    %p68 = por %p66, %p67
    %s70 = sadd.s32 %s69, 1
    %p73 = scmp.eq.s32.totalorder %s14, 1
    %p74 = scmp.ne.s32.totalorder %s69, %s71
    %p75 = scmp.eq.s32.totalorder %s14, 0
    %p76 = por %p74, %p75
    %p77 = scmp.ne.s32.totalorder %s69, %s71
    %p78 = scmp.eq.s32.totalorder %s19, 1
    %p79 = por %p77, %p78
    %p80 = scmp.ne.s32.totalorder %s71, %s72
    %p81 = scmp.eq.s32.totalorder %s19, 0
    %p82 = por %p80, %p81
    %p83 = scmp.ne.s32.totalorder %s71, %s72
    %p84 = scmp.eq.s32.totalorder %s20, 1
    %p85 = por %p83, %p84
    %p87 = scmp.ne.s32.totalorder %s72, %s86
    %p88 = scmp.eq.s32.totalorder %s20, 0
    %p89 = por %p87, %p88
    %s91 = sadd.s32 %s90, 1
    %p94 = scmp.eq.s32.totalorder %s14, 1
    %p95 = scmp.ne.s32.totalorder %s90, %s92
    %p96 = scmp.eq.s32.totalorder %s14, 0
    %p97 = por %p95, %p96
    %p98 = scmp.ne.s32.totalorder %s90, %s92
    %p99 = scmp.eq.s32.totalorder %s19, 1
    %p100 = por %p98, %p99
    %p101 = scmp.ne.s32.totalorder %s92, %s93
    %p102 = scmp.eq.s32.totalorder %s19, 0
    %p103 = por %p101, %p102
    %p104 = scmp.ne.s32.totalorder %s92, %s93
    %p105 = scmp.eq.s32.totalorder %s20, 1
    %p106 = por %p104, %p105
    %p108 = scmp.ne.s32.totalorder %s93, %s107
    %p109 = scmp.eq.s32.totalorder %s20, 0
    %p110 = por %p108, %p109
    %s112 = sadd.s32 %s111, 1
    %p115 = scmp.eq.s32.totalorder %s14, 1
    %p116 = scmp.ne.s32.totalorder %s111, %s113
    %p117 = scmp.eq.s32.totalorder %s14, 0
    %p118 = por %p116, %p117
    %p119 = scmp.ne.s32.totalorder %s111, %s113
    %p120 = scmp.eq.s32.totalorder %s19, 1
    %p121 = por %p119, %p120
    %p122 = scmp.ne.s32.totalorder %s113, %s114
    %p123 = scmp.eq.s32.totalorder %s19, 0
    %p124 = por %p122, %p123
    %p125 = scmp.ne.s32.totalorder %s113, %s114
    %p126 = scmp.eq.s32.totalorder %s20, 1
    %p127 = por %p125, %p126
    %p129 = scmp.ne.s32.totalorder %s114, %s128
    %p130 = scmp.eq.s32.totalorder %s20, 0
    %p131 = por %p129, %p130
    %s133 = sadd.s32 %s132, 1
    %p136 = scmp.eq.s32.totalorder %s14, 1
    %p137 = scmp.ne.s32.totalorder %s132, %s134
    %p138 = scmp.eq.s32.totalorder %s14, 0
    %p139 = por %p137, %p138
    %p140 = scmp.ne.s32.totalorder %s132, %s134
    %p141 = scmp.eq.s32.totalorder %s19, 1
    %p142 = por %p140, %p141
    %p143 = scmp.ne.s32.totalorder %s134, %s135
    %p144 = scmp.eq.s32.totalorder %s19, 0
    %p145 = por %p143, %p144
    %p146 = scmp.ne.s32.totalorder %s134, %s135
    %p147 = scmp.eq.s32.totalorder %s20, 1
    %p148 = por %p146, %p147
    %p150 = scmp.ne.s32.totalorder %s135, %s149
    %p151 = scmp.eq.s32.totalorder %s20, 0
    %p152 = por %p150, %p151
    %s154 = sadd.s32 %s153, 1
    %p157 = scmp.eq.s32.totalorder %s14, 1
    %p158 = scmp.ne.s32.totalorder %s153, %s155
    %p159 = scmp.eq.s32.totalorder %s14, 0
    %p160 = por %p158, %p159
    %p161 = scmp.ne.s32.totalorder %s153, %s155
    %p162 = scmp.eq.s32.totalorder %s19, 1
    %p163 = por %p161, %p162
    %p164 = scmp.ne.s32.totalorder %s155, %s156
    %p165 = scmp.eq.s32.totalorder %s19, 0
    %p166 = por %p164, %p165
    %p167 = scmp.ne.s32.totalorder %s155, %s156
    %p168 = scmp.eq.s32.totalorder %s20, 1
    %p169 = por %p167, %p168
    %p171 = scmp.ne.s32.totalorder %s156, %s170
    %p172 = scmp.eq.s32.totalorder %s20, 0
    %p173 = por %p171, %p172
    %s175 = sadd.s32 %s174, 1
    %p178 = scmp.eq.s32.totalorder %s14, 1
    %p179 = scmp.ne.s32.totalorder %s174, %s176
    %p180 = scmp.eq.s32.totalorder %s14, 0
    %p181 = por %p179, %p180
    %p182 = scmp.ne.s32.totalorder %s174, %s176
    %p183 = scmp.eq.s32.totalorder %s19, 1
    %p184 = por %p182, %p183
    %p185 = scmp.ne.s32.totalorder %s176, %s177
    %p186 = scmp.eq.s32.totalorder %s19, 0
    %p187 = por %p185, %p186
    %p188 = scmp.ne.s32.totalorder %s176, %s177
    %p189 = scmp.eq.s32.totalorder %s20, 1
    %p190 = por %p188, %p189
    %p192 = scmp.ne.s32.totalorder %s177, %s191
    %p193 = scmp.eq.s32.totalorder %s20, 0
    %p194 = por %p192, %p193
    %s195 = ssub.s32 %s14, %s21
    %p196 = scmp.eq.s32.totalorder %s195, 0
    %s198 = sadd.s32 %s197, 1
    %s199 = scalar_select %p196, %s197, %s198
    %p202 = pneg %p196
    %p203 = scmp.eq.s32.totalorder %s14, 1
    %p204 = por %p202, %p203
    %p205 = scmp.ne.s32.totalorder %s197, %s200
    %p206 = scmp.eq.s32.totalorder %s14, 0
    %p207 = por %p205, %p206
    %p208 = scmp.ne.s32.totalorder %s197, %s200
    %p209 = scmp.eq.s32.totalorder %s19, 1
    %p210 = por %p208, %p209
    %p211 = scmp.ne.s32.totalorder %s200, %s201
    %p212 = scmp.eq.s32.totalorder %s19, 0
    %p213 = por %p211, %p212
    %p214 = scmp.ne.s32.totalorder %s200, %s201
    %p215 = scmp.eq.s32.totalorder %s20, 1
    %p216 = por %p214, %p215
    %p218 = scmp.ne.s32.totalorder %s201, %s217
    %p219 = scmp.eq.s32.totalorder %s20, 0
    %p220 = por %p218, %p219
    %p221 = scmp.le.s32.totalorder 1, %s14
    %p222 = scmp.lt.s32.totalorder %s14, 3
    %p223 = pnand %p221, %p222
    %p224 = pneg %p223
    // Predicated region
    $region9: #{conv_block_forward.1} parent=5 // pred_check
      _
    $region10: #{conv_block_forward.1} parent=5 // pred_check_branch
      %226 = sbr.rel (%p223) target = $region12
    $region11: #{conv_block_forward.1} parent=5 // pred_region
      %s227 = ssub.s32 %s14, 1
      // Predicated region
      $region13: #{conv_block_forward.1} parent=11 // pred_check
        %p228 = pneg %p61
      $region14: #{conv_block_forward.1} parent=11 // pred_check_branch
        %230 = sbr.rel (%p228) target = $region16
      $region15: #{conv_block_forward.1} parent=11 // pred_region
        _
      $region16: #{conv_block_forward.1} parent=11 // pred_fallthru
        _
      // Predicated region
      $region17: #{conv_block_forward.1} parent=11 // pred_check
        %p231 = pneg %p82
      $region18: #{conv_block_forward.1} parent=11 // pred_check_branch
        %233 = sbr.rel (%p231) target = $region20
      $region19: #{conv_block_forward.1} parent=11 // pred_region
        _
      $region20: #{conv_block_forward.1} parent=11 // pred_fallthru
        _
      // Predicated region
      $region21: #{conv_block_forward.1} parent=11 // pred_check
        %p234 = pneg %p103
      $region22: #{conv_block_forward.1} parent=11 // pred_check_branch
        %236 = sbr.rel (%p234) target = $region24
      $region23: #{conv_block_forward.1} parent=11 // pred_region
        _
      $region24: #{conv_block_forward.1} parent=11 // pred_fallthru
        _
      // Predicated region
      $region25: #{conv_block_forward.1} parent=11 // pred_check
        %p237 = pneg %p124
      $region26: #{conv_block_forward.1} parent=11 // pred_check_branch
        %239 = sbr.rel (%p237) target = $region28
      $region27: #{conv_block_forward.1} parent=11 // pred_region
        _
      $region28: #{conv_block_forward.1} parent=11 // pred_fallthru
        _
      // Predicated region
      $region29: #{conv_block_forward.1} parent=11 // pred_check
        %p240 = pneg %p145
      $region30: #{conv_block_forward.1} parent=11 // pred_check_branch
        %242 = sbr.rel (%p240) target = $region32
      $region31: #{conv_block_forward.1} parent=11 // pred_region
        _
      $region32: #{conv_block_forward.1} parent=11 // pred_fallthru
        _
      // Predicated region
      $region33: #{conv_block_forward.1} parent=11 // pred_check
        %p243 = pneg %p166
      $region34: #{conv_block_forward.1} parent=11 // pred_check_branch
        %245 = sbr.rel (%p243) target = $region36
      $region35: #{conv_block_forward.1} parent=11 // pred_region
        _
      $region36: #{conv_block_forward.1} parent=11 // pred_fallthru
        _
      // Predicated region
      $region37: #{conv_block_forward.1} parent=11 // pred_check
        %p246 = pneg %p187
      $region38: #{conv_block_forward.1} parent=11 // pred_check_branch
        %248 = sbr.rel (%p246) target = $region40
      $region39: #{conv_block_forward.1} parent=11 // pred_region
        _
      $region40: #{conv_block_forward.1} parent=11 // pred_fallthru
        _
    $region12: #{conv_block_forward.1} parent=5 // pred_fallthru
      _
    %p249 = scmp.lt.s32.totalorder %s14, 2
    // Predicated region
    $region41: #{conv_block_forward.1} parent=5 // pred_check
      %p250 = pneg %p249
    $region42: #{conv_block_forward.1} parent=5 // pred_check_branch
      %252 = sbr.rel (%p250) target = $region44
    $region43: #{conv_block_forward.1} parent=5 // pred_region
      // Predicated region
      $region45: #{conv_block_forward.1} parent=43 // pred_check
        %p253 = pneg %p34
      $region46: #{conv_block_forward.1} parent=43 // pred_check_branch
        %255 = sbr.rel (%p253) target = $region48
      $region47: #{conv_block_forward.1} parent=43 // pred_region
        %p256 = scmp.lt.s32.totalorder %s14, 1
        %s257 = scalar_select %p256, %s14, 1
        %s258 = smul.addr %s257, 8
        %s259 = smul.addr %s258, 4
        %s260 = scalar_lea.vmem %s0, %s259
      $region48: #{conv_block_forward.1} parent=43 // pred_fallthru
        _
    $region44: #{conv_block_forward.1} parent=5 // pred_fallthru
      _
    %p261 = scmp.le.s32.totalorder 1, %s14
    %p262 = scmp.lt.s32.totalorder %s14, 3
    %p263 = pnand %p261, %p262
    %p264 = pneg %p263
    // Predicated region
    $region49: #{conv_block_forward.1} parent=5 // pred_check
      _
    $region50: #{conv_block_forward.1} parent=5 // pred_check_branch
      %266 = sbr.rel (%p263) target = $region52
    $region51: #{conv_block_forward.1} parent=5 // pred_region
      %s267 = ssub.s32 %s14, 1
      %p268 = scmp.lt.s32.totalorder %s19, 1
      %s269 = scalar_select %p268, %s19, 1
      %s270 = smul.addr %s269, 8
      %s271 = smul.addr %s270, 4
      %s272 = scalar_lea.vmem %s0, %s271
      %p273 = pneg %p40
      %p274 = pneg %p37
      %p275 = pneg %p61
      %p276 = pneg %p58
      %p277 = pneg %p82
      %p278 = pneg %p79
      %p279 = pneg %p103
      %p280 = pneg %p100
      %p281 = pneg %p124
      %p282 = pneg %p121
      %p283 = pneg %p145
      %p284 = pneg %p142
      %p285 = pneg %p166
      %p286 = pneg %p163
      %p287 = pneg %p187
      %p288 = pneg %p184
      %p289 = pneg %p213
      %p290 = pneg %p210
      %p291 = scmp.lt.s32.totalorder %s19, 1
      %s292 = scalar_select %p291, %s19, 1
      %s293 = smul.addr %s292, 3
      %s294 = smul.addr %s293, 8
      %s295 = scalar_lea.vmem %s8, %s294
      %p296 = scmp.lt.s32.totalorder %s19, 1
      %s297 = scalar_select %p296, %s19, 1
      %s298 = smul.addr %s297, 8
      %s299 = smul.addr %s298, 4
      %s300 = scalar_lea.vmem %s0, %s299
      %p301 = scmp.lt.s32.totalorder %s19, 1
      %s302 = scalar_select %p301, %s19, 1
      %s303 = smul.addr %s302, 3
      %s304 = smul.addr %s303, 8
      %s305 = scalar_lea.vmem %s8, %s304
      %v307 = vld [vmem:[%s300] sm:$0xff]
      %v308 = vld [vmem:[%s300 + $0x8] sm:$0xf]
      %v309 = vld [vmem:[%s300 + $0x10] sm:$0xff]
      %v310 = vld [vmem:[%s300 + $0x18] sm:$0xf]
      %315 = vrot.lane.b32.xlu0 %v307, 111
      %v316 = vpop.permute.xlu0 %315
      %317 = vrot.lane.b32.xlu0 %v308, 111
      %v318 = vpop.permute.xlu0 %317
      %319 = vrot.lane.b32.xlu0 %v309, 111
      %v320 = vpop.permute.xlu0 %319
      %321 = vrot.lane.b32.xlu0 %v310, 111
      %v322 = vpop.permute.xlu0 %321
      %v323 = vrot.slane %v316, 4
      %v324 = vrot.slane %v318, 4
      %v325 = vrot.slane %v320, 4
      %v326 = vrot.slane %v322, 4
      %vm327 = vcmask 1043456
      %v328 = vsel %vm327, %v323, %v324
      %vm329 = vcmask 908288
      %v330 = vsel %vm329, %v316, %v328
      %v331 = vsel %vm327, %v325, %v326
      %v332 = vsel %vm329, %v320, %v331
      %337 = vst [vmem:[#allocation3] sm:$0xff] %v330
      %vm338 = vcmask 551936
      %339 = vst.msk [vmem:[#allocation3 + $0x8] sm:$0xf] %vm338, %v318
      %340 = vst [vmem:[#allocation3 + $0xc] sm:$0xff] %v332
      %341 = vst.msk [vmem:[#allocation3 + $0x14] sm:$0xf] %vm338, %v322
      %v342 = vld [vmem:[%s300] sm:$0xff]
      %v343 = vld [vmem:[%s300 + $0x8] sm:$0xf]
      %v344 = vld [vmem:[%s300 + $0x10] sm:$0xff]
      %v345 = vld [vmem:[%s300 + $0x18] sm:$0xf]
      %350 = vrot.lane.b32.xlu0 %v342, 110
      %v351 = vpop.permute.xlu0 %350
      %352 = vrot.lane.b32.xlu0 %v343, 110
      %v353 = vpop.permute.xlu0 %352
      %354 = vrot.lane.b32.xlu0 %v344, 110
      %v355 = vpop.permute.xlu0 %354
      %356 = vrot.lane.b32.xlu0 %v345, 110
      %v357 = vpop.permute.xlu0 %356
      %v358 = vrot.slane %v351, 4
      %v359 = vrot.slane %v353, 4
      %v360 = vrot.slane %v355, 4
      %v361 = vrot.slane %v357, 4
      %v362 = vsel %vm327, %v358, %v359
      %vm363 = vcmask 900096
      %v364 = vsel %vm363, %v351, %v362
      %v365 = vsel %vm327, %v360, %v361
      %v366 = vsel %vm363, %v355, %v365
      %371 = vst [vmem:[#allocation3 + $0x18] sm:$0xff] %v364
      %372 = vst.msk [vmem:[#allocation3 + $0x20] sm:$0xf] %vm338, %v353
      %373 = vst [vmem:[#allocation3 + $0x24] sm:$0xff] %v366
      %374 = vst.msk [vmem:[#allocation3 + $0x2c] sm:$0xf] %vm338, %v357
      %v375 = vld [vmem:[%s300] sm:$0xff]
      %v376 = vld [vmem:[%s300 + $0x8] sm:$0xf]
      %v377 = vld [vmem:[%s300 + $0x10] sm:$0xff]
      %v378 = vld [vmem:[%s300 + $0x18] sm:$0xf]
      %383 = vrot.lane.b32.xlu0 %v375, 109
      %v384 = vpop.permute.xlu0 %383
      %385 = vrot.lane.b32.xlu0 %v376, 109
      %v386 = vpop.permute.xlu0 %385
      %387 = vrot.lane.b32.xlu0 %v377, 109
      %v388 = vpop.permute.xlu0 %387
      %389 = vrot.lane.b32.xlu0 %v378, 109
      %v390 = vpop.permute.xlu0 %389
      %v391 = vrot.slane %v384, 4
      %v392 = vrot.slane %v386, 4
      %v393 = vrot.slane %v388, 4
      %v394 = vrot.slane %v390, 4
      %v395 = vsel %vm327, %v391, %v392
      %vm396 = vcmask 891904
      %v397 = vsel %vm396, %v384, %v395
      %v398 = vsel %vm327, %v393, %v394
      %v399 = vsel %vm396, %v388, %v398
      %404 = vst [vmem:[#allocation3 + $0x30] sm:$0xff] %v397
      %405 = vst.msk [vmem:[#allocation3 + $0x38] sm:$0xf] %vm338, %v386
      %406 = vst [vmem:[#allocation3 + $0x3c] sm:$0xff] %v399
      %407 = vst.msk [vmem:[#allocation3 + $0x44] sm:$0xf] %vm338, %v390
      %v408 = vld [vmem:[%s300] sm:$0xff]
      %v409 = vld [vmem:[%s300 + $0x8] sm:$0xf]
      %v410 = vld [vmem:[%s300 + $0x10] sm:$0xff]
      %v411 = vld [vmem:[%s300 + $0x18] sm:$0xf]
      %416 = vrot.lane.b32.xlu0 %v408, 93
      %v417 = vpop.permute.xlu0 %416
      %418 = vrot.lane.b32.xlu0 %v409, 93
      %v419 = vpop.permute.xlu0 %418
      %420 = vrot.lane.b32.xlu0 %v410, 93
      %v421 = vpop.permute.xlu0 %420
      %422 = vrot.lane.b32.xlu0 %v411, 93
      %v423 = vpop.permute.xlu0 %422
      %v424 = vrot.slane %v417, 4
      %v425 = vrot.slane %v419, 4
      %v426 = vrot.slane %v421, 4
      %v427 = vrot.slane %v423, 4
      %v428 = vsel %vm327, %v424, %v425
      %vm429 = vcmask 760832
      %v430 = vsel %vm429, %v417, %v428
      %v431 = vsel %vm327, %v426, %v427
      %v432 = vsel %vm429, %v421, %v431
      %437 = vst [vmem:[#allocation3 + $0x48] sm:$0xff] %v430
      %438 = vst.msk [vmem:[#allocation3 + $0x50] sm:$0xf] %vm338, %v419
      %439 = vst [vmem:[#allocation3 + $0x54] sm:$0xff] %v432
      %440 = vst.msk [vmem:[#allocation3 + $0x5c] sm:$0xf] %vm338, %v423
      %v441 = vld [vmem:[%s300] sm:$0xff]
      %v442 = vld [vmem:[%s300 + $0x8] sm:$0xf]
      %v443 = vld [vmem:[%s300 + $0x10] sm:$0xff]
      %v444 = vld [vmem:[%s300 + $0x18] sm:$0xf]
      %449 = vrot.lane.b32.xlu0 %v441, 92
      %v450 = vpop.permute.xlu0 %449
      %451 = vrot.lane.b32.xlu0 %v442, 92
      %v452 = vpop.permute.xlu0 %451
      %453 = vrot.lane.b32.xlu0 %v443, 92
      %v454 = vpop.permute.xlu0 %453
      %455 = vrot.lane.b32.xlu0 %v444, 92
      %v456 = vpop.permute.xlu0 %455
      %v457 = vrot.slane %v450, 4
      %v458 = vrot.slane %v452, 4
      %v459 = vrot.slane %v454, 4
      %v460 = vrot.slane %v456, 4
      %v461 = vsel %vm327, %v457, %v458
      %vm462 = vcmask 752640
      %v463 = vsel %vm462, %v450, %v461
      %v464 = vsel %vm327, %v459, %v460
      %v465 = vsel %vm462, %v454, %v464
      %470 = vst [vmem:[#allocation3 + $0x60] sm:$0xff] %v463
      %471 = vst.msk [vmem:[#allocation3 + $0x68] sm:$0xf] %vm338, %v452
      %472 = vst [vmem:[#allocation3 + $0x6c] sm:$0xff] %v465
      %473 = vst.msk [vmem:[#allocation3 + $0x74] sm:$0xf] %vm338, %v456
      %v474 = vld [vmem:[%s300] sm:$0xff]
      %v475 = vld [vmem:[%s300 + $0x8] sm:$0xf]
      %v476 = vld [vmem:[%s300 + $0x10] sm:$0xff]
      %v477 = vld [vmem:[%s300 + $0x18] sm:$0xf]
      %482 = vrot.lane.b32.xlu0 %v474, 91
      %v483 = vpop.permute.xlu0 %482
      %484 = vrot.lane.b32.xlu0 %v475, 91
      %v485 = vpop.permute.xlu0 %484
      %486 = vrot.lane.b32.xlu0 %v476, 91
      %v487 = vpop.permute.xlu0 %486
      %488 = vrot.lane.b32.xlu0 %v477, 91
      %v489 = vpop.permute.xlu0 %488
      %v490 = vrot.slane %v483, 4
      %v491 = vrot.slane %v485, 4
      %v492 = vrot.slane %v487, 4
      %v493 = vrot.slane %v489, 4
      %v494 = vsel %vm327, %v490, %v491
      %vm495 = vcmask 744448
      %v496 = vsel %vm495, %v483, %v494
      %v497 = vsel %vm327, %v492, %v493
      %v498 = vsel %vm495, %v487, %v497
      %503 = vst [vmem:[#allocation3 + $0x78] sm:$0xff] %v496
      %504 = vst.msk [vmem:[#allocation3 + $0x80] sm:$0xf] %vm338, %v485
      %505 = vst [vmem:[#allocation3 + $0x84] sm:$0xff] %v498
      %506 = vst.msk [vmem:[#allocation3 + $0x8c] sm:$0xf] %vm338, %v489
      %v507 = vld [vmem:[%s300] sm:$0xff]
      %v508 = vld [vmem:[%s300 + $0x8] sm:$0xf]
      %v509 = vld [vmem:[%s300 + $0x10] sm:$0xff]
      %v510 = vld [vmem:[%s300 + $0x18] sm:$0xf]
      %515 = vrot.lane.b32.xlu0 %v507, 75
      %v516 = vpop.permute.xlu0 %515
      %517 = vrot.lane.b32.xlu0 %v508, 75
      %v518 = vpop.permute.xlu0 %517
      %519 = vrot.lane.b32.xlu0 %v509, 75
      %v520 = vpop.permute.xlu0 %519
      %521 = vrot.lane.b32.xlu0 %v510, 75
      %v522 = vpop.permute.xlu0 %521
      %v523 = vrot.slane %v516, 4
      %v524 = vrot.slane %v518, 4
      %v525 = vrot.slane %v520, 4
      %v526 = vrot.slane %v522, 4
      %v527 = vsel %vm327, %v523, %v524
      %vm528 = vcmask 613376
      %v529 = vsel %vm528, %v516, %v527
      %v530 = vsel %vm327, %v525, %v526
      %v531 = vsel %vm528, %v520, %v530
      %536 = vst [vmem:[#allocation3 + $0x90] sm:$0xff] %v529
      %537 = vst.msk [vmem:[#allocation3 + $0x98] sm:$0xf] %vm338, %v518
      %538 = vst [vmem:[#allocation3 + $0x9c] sm:$0xff] %v531
      %539 = vst.msk [vmem:[#allocation3 + $0xa4] sm:$0xf] %vm338, %v522
      %v540 = vld [vmem:[%s300] sm:$0xff]
      %v541 = vld [vmem:[%s300 + $0x8] sm:$0xf]
      %v542 = vld [vmem:[%s300 + $0x10] sm:$0xff]
      %v543 = vld [vmem:[%s300 + $0x18] sm:$0xf]
      %548 = vrot.lane.b32.xlu0 %v540, 74
      %v549 = vpop.permute.xlu0 %548
      %550 = vrot.lane.b32.xlu0 %v541, 74
      %v551 = vpop.permute.xlu0 %550
      %552 = vrot.lane.b32.xlu0 %v542, 74
      %v553 = vpop.permute.xlu0 %552
      %554 = vrot.lane.b32.xlu0 %v543, 74
      %v555 = vpop.permute.xlu0 %554
      %v556 = vrot.slane %v549, 4
      %v557 = vrot.slane %v551, 4
      %v558 = vrot.slane %v553, 4
      %v559 = vrot.slane %v555, 4
      %v560 = vsel %vm327, %v556, %v557
      %vm561 = vcmask 605184
      %v562 = vsel %vm561, %v549, %v560
      %v563 = vsel %vm327, %v558, %v559
      %v564 = vsel %vm561, %v553, %v563
      %569 = vst [vmem:[#allocation3 + $0xa8] sm:$0xff] %v562
      %570 = vst.msk [vmem:[#allocation3 + $0xb0] sm:$0xf] %vm338, %v551
      %571 = vst [vmem:[#allocation3 + $0xb4] sm:$0xff] %v564
      %572 = vst.msk [vmem:[#allocation3 + $0xbc] sm:$0xf] %vm338, %v555
      %v573 = vld [vmem:[%s300] sm:$0xff]
      %v574 = vld [vmem:[%s300 + $0x8] sm:$0xf]
      %v575 = vld [vmem:[%s300 + $0x10] sm:$0xff]
      %v576 = vld [vmem:[%s300 + $0x18] sm:$0xf]
      %581 = vrot.lane.b32.xlu0 %v573, 73
      %v582 = vpop.permute.xlu0 %581
      %583 = vrot.lane.b32.xlu0 %v574, 73
      %v584 = vpop.permute.xlu0 %583
      %585 = vrot.lane.b32.xlu0 %v575, 73
      %v586 = vpop.permute.xlu0 %585
      %587 = vrot.lane.b32.xlu0 %v576, 73
      %v588 = vpop.permute.xlu0 %587
      %v589 = vrot.slane %v582, 4
      %v590 = vrot.slane %v584, 4
      %v591 = vrot.slane %v586, 4
      %v592 = vrot.slane %v588, 4
      %v593 = vsel %vm327, %v589, %v590
      %vm594 = vcmask 596992
      %v595 = vsel %vm594, %v582, %v593
      %v596 = vsel %vm327, %v591, %v592
      %v597 = vsel %vm594, %v586, %v596
      %602 = vst [vmem:[#allocation3 + $0xc0] sm:$0xff] %v595
      %603 = vst.msk [vmem:[#allocation3 + $0xc8] sm:$0xf] %vm338, %v584
      %604 = vst [vmem:[#allocation3 + $0xcc] sm:$0xff] %v597
      %605 = vst.msk [vmem:[#allocation3 + $0xd4] sm:$0xf] %vm338, %v588
      %v606 = vld [vmem:[%s1] sm:$0xff]
      %v607 = vld [vmem:[%s1 + $0x8] sm:$0xff]
      %v608 = vld [vmem:[#allocation3] sm:$0xff]
      %v609 = vld [vmem:[#allocation3 + $0x8] sm:$0xf]
      %v610 = vld [vmem:[#allocation3 + $0xc] sm:$0xff]
      %v611 = vld [vmem:[#allocation3 + $0x14] sm:$0xf]
      %v612 = vld [vmem:[#allocation3 + $0x18] sm:$0xff]
      %v613 = vld [vmem:[#allocation3 + $0x20] sm:$0xf]
      %v614 = vld [vmem:[#allocation3 + $0x24] sm:$0xff]
      %v615 = vld [vmem:[#allocation3 + $0x2c] sm:$0xf]
      %v616 = vld [vmem:[#allocation3 + $0x30] sm:$0xff]
      %v617 = vld [vmem:[#allocation3 + $0x38] sm:$0xf]
      %v618 = vld [vmem:[#allocation3 + $0x3c] sm:$0xff]
      %v619 = vld [vmem:[#allocation3 + $0x44] sm:$0xf]
      %v620 = vld [vmem:[#allocation3 + $0x48] sm:$0xff]
      %v621 = vld [vmem:[#allocation3 + $0x50] sm:$0xf]
      %v622 = vld [vmem:[#allocation3 + $0x54] sm:$0xff]
      %v623 = vld [vmem:[#allocation3 + $0x5c] sm:$0xf]
      %v624 = vld [vmem:[#allocation3 + $0x60] sm:$0xff]
      %v625 = vld [vmem:[#allocation3 + $0x68] sm:$0xf]
      %v626 = vld [vmem:[#allocation3 + $0x6c] sm:$0xff]
      %v627 = vld [vmem:[#allocation3 + $0x74] sm:$0xf]
      %v628 = vld [vmem:[#allocation3 + $0x78] sm:$0xff]
      %v629 = vld [vmem:[#allocation3 + $0x80] sm:$0xf]
      %v630 = vld [vmem:[#allocation3 + $0x84] sm:$0xff]
      %v631 = vld [vmem:[#allocation3 + $0x8c] sm:$0xf]
      %v632 = vld [vmem:[#allocation3 + $0x90] sm:$0xff]
      %v633 = vld [vmem:[#allocation3 + $0x98] sm:$0xf]
      %v634 = vld [vmem:[#allocation3 + $0x9c] sm:$0xff]
      %v635 = vld [vmem:[#allocation3 + $0xa4] sm:$0xf]
      %v636 = vld [vmem:[#allocation3 + $0xa8] sm:$0xff]
      %v637 = vld [vmem:[#allocation3 + $0xb0] sm:$0xf]
      %v638 = vld [vmem:[#allocation3 + $0xb4] sm:$0xff]
      %v639 = vld [vmem:[#allocation3 + $0xbc] sm:$0xf]
      %v640 = vld [vmem:[#allocation3 + $0xc0] sm:$0xff]
      %v641 = vld [vmem:[#allocation3 + $0xc8] sm:$0xf]
      %v642 = vld [vmem:[#allocation3 + $0xcc] sm:$0xff]
      %v643 = vld [vmem:[#allocation3 + $0xd4] sm:$0xf]
      %v646 = vunpack.c.l.b16 %v606
      %v647 = vunpack.c.h.b16 %v606
      %v648 = vunpack.c.l.b16 %v607
      %v649 = vunpack.c.h.b16 %v607
      %v650 = vpack.c.b16 %v648, %v646
      %v651 = vpack.c.b16 %v649, %v647
      %v689 = vunpack.c.l.b16 %v608
      %v690 = vunpack.c.h.b16 %v608
      %v691 = vunpack.c.l.b16 %v609
      %v692 = vunpack.c.l.b16 %v610
      %v693 = vunpack.c.h.b16 %v610
      %v694 = vunpack.c.l.b16 %v611
      %v695 = vunpack.c.l.b16 %v612
      %v696 = vunpack.c.h.b16 %v612
      %v697 = vunpack.c.l.b16 %v613
      %v698 = vunpack.c.l.b16 %v614
      %v699 = vunpack.c.h.b16 %v614
      %v700 = vunpack.c.l.b16 %v615
      %v701 = vunpack.c.l.b16 %v616
      %v702 = vunpack.c.h.b16 %v616
      %v703 = vunpack.c.l.b16 %v617
      %v704 = vunpack.c.l.b16 %v618
      %v705 = vunpack.c.h.b16 %v618
      %v706 = vunpack.c.l.b16 %v619
      %v707 = vunpack.c.l.b16 %v620
      %v708 = vunpack.c.h.b16 %v620
      %v709 = vunpack.c.l.b16 %v621
      %v710 = vunpack.c.l.b16 %v622
      %v711 = vunpack.c.h.b16 %v622
      %v712 = vunpack.c.l.b16 %v623
      %v713 = vunpack.c.l.b16 %v624
      %v714 = vunpack.c.h.b16 %v624
      %v715 = vunpack.c.l.b16 %v625
      %v716 = vunpack.c.l.b16 %v626
      %v717 = vunpack.c.h.b16 %v626
      %v718 = vunpack.c.l.b16 %v627
      %v719 = vunpack.c.l.b16 %v628
      %v720 = vunpack.c.h.b16 %v628
      %v721 = vunpack.c.l.b16 %v629
      %v722 = vunpack.c.l.b16 %v630
      %v723 = vunpack.c.h.b16 %v630
      %v724 = vunpack.c.l.b16 %v631
      %v725 = vunpack.c.l.b16 %v632
      %v726 = vunpack.c.h.b16 %v632
      %v727 = vunpack.c.l.b16 %v633
      %v728 = vunpack.c.l.b16 %v634
      %v729 = vunpack.c.h.b16 %v634
      %v730 = vunpack.c.l.b16 %v635
      %v731 = vunpack.c.l.b16 %v636
      %v732 = vunpack.c.h.b16 %v636
      %v733 = vunpack.c.l.b16 %v637
      %v734 = vunpack.c.l.b16 %v638
      %v735 = vunpack.c.h.b16 %v638
      %v736 = vunpack.c.l.b16 %v639
      %v737 = vunpack.c.l.b16 %v640
      %v738 = vunpack.c.h.b16 %v640
      %v739 = vunpack.c.l.b16 %v641
      %v740 = vunpack.c.l.b16 %v642
      %v741 = vunpack.c.h.b16 %v642
      %v742 = vunpack.c.l.b16 %v643
      %v743 = vpack.c.b16 %v692, %v689
      %v744 = vpack.c.b16 %v693, %v690
      %v745 = vpack.c.b16 %v694, %v691
      %v746 = vpack.c.b16 %v698, %v695
      %v747 = vpack.c.b16 %v699, %v696
      %v748 = vpack.c.b16 %v700, %v697
      %v749 = vpack.c.b16 %v704, %v701
      %v750 = vpack.c.b16 %v705, %v702
      %v751 = vpack.c.b16 %v706, %v703
      %v752 = vpack.c.b16 %v710, %v707
      %v753 = vpack.c.b16 %v711, %v708
      %v754 = vpack.c.b16 %v712, %v709
      %v755 = vpack.c.b16 %v716, %v713
      %v756 = vpack.c.b16 %v717, %v714
      %v757 = vpack.c.b16 %v718, %v715
      %v758 = vpack.c.b16 %v722, %v719
      %v759 = vpack.c.b16 %v723, %v720
      %v760 = vpack.c.b16 %v724, %v721
      %v761 = vpack.c.b16 %v728, %v725
      %v762 = vpack.c.b16 %v729, %v726
      %v763 = vpack.c.b16 %v730, %v727
      %v764 = vpack.c.b16 %v734, %v731
      %v765 = vpack.c.b16 %v735, %v732
      %v766 = vpack.c.b16 %v736, %v733
      %v767 = vpack.c.b16 %v740, %v737
      %v768 = vpack.c.b16 %v741, %v738
      %v769 = vpack.c.b16 %v742, %v739
      %vm797 = vcmask 130048
      %v799 = vsel %vm797, %v651, 0
      %801 = vmatprep.subr.bf16.mxu0 %v765
      %802 = vmatpush1.bf16.msra.mxu0 %v764
      %803 = vmatprep.subr.bf16.mxu0 %v762
      %804 = vmatpush1.bf16.msra.mxu0 %v761
      %805 = vmatprep.subr.bf16.mxu0 %v759
      %806 = vmatpush1.bf16.msra.mxu0 %v758
      %807 = vmatprep.subr.bf16.mxu0 %v756
      %808 = vmatpush1.bf16.msra.mxu0 %v755
      %809 = vmatprep.subr.bf16.mxu0 %v753
      %810 = vmatpush1.bf16.msra.mxu0 %v752
      %811 = vmatprep.subr.bf16.mxu0 %v750
      %812 = vmatpush1.bf16.msra.mxu0 %v749
      %813 = vmatprep.subr.bf16.mxu0 %v747
      %814 = vmatpush1.bf16.msra.mxu0 %v746
      %815 = vmatprep.subr.bf16.mxu0 %v744
      %816 = vmatpush1.bf16.msra.mxu0 %v743
      %817 = vmatprep.subr.bf16.mxu0 0
      %818 = vmatpush2.bf16.msra.mxu0 0
      %819 = vmatprep.subr.bf16.mxu0 0
      %820 = vmatpush2.bf16.msra.mxu0 0
      %821 = vmatprep.subr.bf16.mxu0 0
      %822 = vmatpush2.bf16.msra.mxu0 0
      %823 = vmatprep.subr.bf16.mxu0 0
      %824 = vmatpush2.bf16.msra.mxu0 0
      %825 = vmatprep.subr.bf16.mxu0 0
      %826 = vmatpush2.bf16.msra.mxu0 0
      %827 = vmatprep.subr.bf16.mxu0 0
      %828 = vmatpush2.bf16.msra.mxu0 0
      %829 = vmatprep.subr.bf16.mxu0 0
      %830 = vmatpush2.bf16.msra.mxu0 0
      %831 = vmatprep.subr.bf16.mxu0 %v768
      %832 = vmatpush2.bf16.msra.mxu0 %v767
      %833 = vmatprep.mubr.bf16.mxu0 %v799
      %834 = vmatmul.mubr.bf16.gmra.mxu0 %v650
      %v835 = vpop.f32.mrf.mxu0
      %v836 = vadd.f32 0.0, %v835
      %v837 = vpop.f32.mrf.mxu0
      %v838 = vadd.f32 0.0, %v837
      %v839 = vpop.f32.mrf.mxu0
      %v840 = vadd.f32 0.0, %v839
      %v841 = vpop.f32.mrf.mxu0
      %v842 = vadd.f32 0.0, %v841
      %843 = vdwg.mxu0
      %844 = vmatprep.subr.bf16.mxu0 0
      %845 = vmatpush1.bf16.msra.mxu0 %v766
      %846 = vmatprep.subr.bf16.mxu0 0
      %847 = vmatpush1.bf16.msra.mxu0 %v763
      %848 = vmatprep.subr.bf16.mxu0 0
      %849 = vmatpush1.bf16.msra.mxu0 %v760
      %850 = vmatprep.subr.bf16.mxu0 0
      %851 = vmatpush1.bf16.msra.mxu0 %v757
      %852 = vmatprep.subr.bf16.mxu0 0
      %853 = vmatpush1.bf16.msra.mxu0 %v754
      %854 = vmatprep.subr.bf16.mxu0 0
      %855 = vmatpush1.bf16.msra.mxu0 %v751
      %856 = vmatprep.subr.bf16.mxu0 0
      %857 = vmatpush1.bf16.msra.mxu0 %v748
      %858 = vmatprep.subr.bf16.mxu0 0
      %859 = vmatpush1.bf16.msra.mxu0 %v745
      %860 = vmatprep.subr.bf16.mxu0 0
      %861 = vmatpush2.bf16.msra.mxu0 0
      %862 = vmatprep.subr.bf16.mxu0 0
      %863 = vmatpush2.bf16.msra.mxu0 0
      %864 = vmatprep.subr.bf16.mxu0 0
      %865 = vmatpush2.bf16.msra.mxu0 0
      %866 = vmatprep.subr.bf16.mxu0 0
      %867 = vmatpush2.bf16.msra.mxu0 0
      %868 = vmatprep.subr.bf16.mxu0 0
      %869 = vmatpush2.bf16.msra.mxu0 0
      %870 = vmatprep.subr.bf16.mxu0 0
      %871 = vmatpush2.bf16.msra.mxu0 0
      %872 = vmatprep.subr.bf16.mxu0 0
      %873 = vmatpush2.bf16.msra.mxu0 0
      %874 = vmatprep.subr.bf16.mxu0 0
      %875 = vmatpush2.bf16.msra.mxu0 %v769
      %876 = vmatprep.mubr.bf16.mxu0 %v799
      %877 = vmatmul.mubr.bf16.gmra.mxu0 %v650
      %v878 = vpop.f32.mrf.mxu0
      %v879 = vadd.f32 0.0, %v878
      %v880 = vpop.f32.mrf.mxu0
      %v881 = vpop.f32.mrf.mxu0
      %v882 = vadd.f32 0.0, %v881
      %v883 = vpop.f32.mrf.mxu0
      %884 = vdwg.mxu0
      %v885 = vld [vmem:[%s3] sm:$0xff]
      %v886 = vld [vmem:[%s3 + $0x8] sm:$0xff]
      %888 = vset.pattern.permute.xlu0 0
      %889 = vperm.xlu0 %888, %v885
      %v890 = vpop.permute.xlu0 %889
      %893 = vset.pattern.permute.xlu0 0
      %894 = vperm.xlu0 %893, %v886
      %v895 = vpop.permute.xlu0 %894
      %v897 = vmul.f32 %v836, %v890
      %v898 = vmul.f32 %v838, %v890
      %v899 = vmul.f32 %v879, %v890
      %v900 = vmul.f32 %v840, %v895
      %v901 = vmul.f32 %v842, %v895
      %v902 = vmul.f32 %v882, %v895
      %v903 = vld [vmem:[%s4] sm:$0xff]
      %v904 = vld [vmem:[%s4 + $0x8] sm:$0xff]
      %906 = vset.pattern.permute.xlu0 0
      %907 = vperm.xlu0 %906, %v903
      %v908 = vpop.permute.xlu0 %907
      %911 = vset.pattern.permute.xlu0 0
      %912 = vperm.xlu0 %911, %v904
      %v913 = vpop.permute.xlu0 %912
      %v915 = vadd.f32 %v897, %v908
      %v916 = vadd.f32 %v898, %v908
      %v917 = vadd.f32 %v899, %v908
      %v918 = vadd.f32 %v900, %v913
      %v919 = vadd.f32 %v901, %v913
      %v920 = vadd.f32 %v902, %v913
      %vm921 = vcmp.ge.f32.partialorder %v915, 0.0
      %vm922 = vcmp.ge.f32.partialorder %v916, 0.0
      %vm923 = vcmp.ge.f32.partialorder %v917, 0.0
      %vm924 = vcmp.ge.f32.partialorder %v918, 0.0
      %vm925 = vcmp.ge.f32.partialorder %v919, 0.0
      %vm926 = vcmp.ge.f32.partialorder %v920, 0.0
      %v927 = vmul.f32 %v915, 0.01
      %v928 = vmul.f32 %v916, 0.01
      %v929 = vmul.f32 %v917, 0.01
      %v930 = vmul.f32 %v918, 0.01
      %v931 = vmul.f32 %v919, 0.01
      %v932 = vmul.f32 %v920, 0.01
      %v933 = vsel %vm921, %v915, %v927
      %v934 = vsel %vm922, %v916, %v928
      %v935 = vsel %vm923, %v917, %v929
      %v936 = vsel %vm924, %v918, %v930
      %v937 = vsel %vm925, %v919, %v931
      %v938 = vsel %vm926, %v920, %v932
      %v939 = vld [vmem:[%s7] sm:$0x7]
      %v941 = vlaneseq
      %v942 = vshrl.u32 %v941, 7
      %v943 = vsub.s32 0, %v942
      %v944 = vrot.slane %v939, %v943
      %v945 = vlaneseq
      %v946 = vshrl.u32 %v945, 7
      %v947 = vsub.s32 1, %v946
      %v948 = vrot.slane %v939, %v947
      %v949 = vlaneseq
      %v950 = vshrl.u32 %v949, 7
      %v951 = vsub.s32 2, %v950
      %v952 = vrot.slane %v939, %v951
      %v956 = vmul.f32 %v933, %v944
      %v957 = vmul.f32 %v934, %v948
      %v958 = vmul.f32 %v935, %v952
      %v959 = vmul.f32 %v936, %v944
      %v960 = vmul.f32 %v937, %v948
      %v961 = vmul.f32 %v938, %v952
      %962 = vst [vmem:[#allocation2] sm:$0xf] 0
      %963 = vst [vmem:[#allocation2 + $0x14] sm:$0xf] 0
      %vm964 = vcmask 1044000
      %vm965 = vcmask 556036
      %vm966 = vmor %vm965, %vm964
      %967 = vst.msk [vmem:[#allocation2 + $0xc] sm:$0xff] %vm966, 0
      %968 = vst.msk [vmem:[#allocation2 + $0x20] sm:$0xff] %vm966, 0
      %v969 = vpack.c.bf16 %v959, %v956
      %v970 = vpack.c.bf16 %v960, %v957
      %v971 = vpack.c.bf16 %v961, %v958
      %v975 = vunpack.c.l.b16 %v969
      %v976 = vunpack.c.l.b16 %v970
      %v977 = vunpack.c.l.b16 %v971
      %v978 = vunpack.c.h.b16 %v969
      %v979 = vunpack.c.h.b16 %v970
      %v980 = vunpack.c.h.b16 %v971
      %v981 = vpack.c.b16 %v976, %v975
      %v982 = vpack.c.b16 %v977, %v977
      %v983 = vpack.c.b16 %v979, %v978
      %v984 = vpack.c.b16 %v980, %v980
      %989 = vst [vmem:[#allocation2 + $0x4] sm:$0xff] %v981
      %990 = vst.msk [vmem:[#allocation2 + $0xc] sm:$0xf] %vm338, %v982
      %991 = vst [vmem:[#allocation2 + $0x18] sm:$0xff] %v983
      %992 = vst.msk [vmem:[#allocation2 + $0x20] sm:$0xf] %vm338, %v984
      %v993 = vld [vmem:[#allocation2] sm:$0xff]
      %v994 = vld [vmem:[#allocation2 + $0x8] sm:$0xff]
      %v995 = vld [vmem:[#allocation2 + $0x14] sm:$0xff]
      %v996 = vld [vmem:[#allocation2 + $0x1c] sm:$0xff]
      %1001 = vrot.lane.b32.xlu0 %v993, 19
      %v1002 = vpop.permute.xlu0 %1001
      %1003 = vrot.lane.b32.xlu0 %v994, 19
      %v1004 = vpop.permute.xlu0 %1003
      %1005 = vrot.lane.b32.xlu0 %v995, 19
      %v1006 = vpop.permute.xlu0 %1005
      %1007 = vrot.lane.b32.xlu0 %v996, 19
      %v1008 = vpop.permute.xlu0 %1007
      %v1009 = vrot.slane %v1002, 4
      %v1010 = vrot.slane %v1004, 4
      %v1011 = vrot.slane %v1006, 4
      %v1012 = vrot.slane %v1008, 4
      %v1013 = vsel %vm327, %v1009, %v1010
      %vm1014 = vcmask 154624
      %v1015 = vsel %vm1014, %v1002, %v1013
      %v1016 = vsel %vm1014, %v1004, %v1010
      %v1017 = vsel %vm327, %v1011, %v1012
      %v1018 = vsel %vm1014, %v1006, %v1017
      %v1019 = vsel %vm1014, %v1008, %v1012
      %1024 = vst [vmem:[#allocation3] sm:$0xff] %v1015
      %1025 = vst.msk [vmem:[#allocation3 + $0x8] sm:$0xf] %vm338, %v1016
      %1026 = vst [vmem:[#allocation3 + $0xc] sm:$0xff] %v1018
      %1027 = vst.msk [vmem:[#allocation3 + $0x14] sm:$0xf] %vm338, %v1019
      %v1028 = vld [vmem:[#allocation2] sm:$0xff]
      %v1029 = vld [vmem:[#allocation2 + $0x8] sm:$0xff]
      %v1030 = vld [vmem:[#allocation2 + $0x14] sm:$0xff]
      %v1031 = vld [vmem:[#allocation2 + $0x1c] sm:$0xff]
      %1036 = vrot.lane.b32.xlu0 %v1028, 18
      %v1037 = vpop.permute.xlu0 %1036
      %1038 = vrot.lane.b32.xlu0 %v1029, 18
      %v1039 = vpop.permute.xlu0 %1038
      %1040 = vrot.lane.b32.xlu0 %v1030, 18
      %v1041 = vpop.permute.xlu0 %1040
      %1042 = vrot.lane.b32.xlu0 %v1031, 18
      %v1043 = vpop.permute.xlu0 %1042
      %v1044 = vrot.slane %v1037, 4
      %v1045 = vrot.slane %v1039, 4
      %v1046 = vrot.slane %v1041, 4
      %v1047 = vrot.slane %v1043, 4
      %v1048 = vsel %vm327, %v1044, %v1045
      %vm1049 = vcmask 146432
      %v1050 = vsel %vm1049, %v1037, %v1048
      %v1051 = vsel %vm1049, %v1039, %v1045
      %v1052 = vsel %vm327, %v1046, %v1047
      %v1053 = vsel %vm1049, %v1041, %v1052
      %v1054 = vsel %vm1049, %v1043, %v1047
      %1059 = vst [vmem:[#allocation3 + $0x18] sm:$0xff] %v1050
      %1060 = vst.msk [vmem:[#allocation3 + $0x20] sm:$0xf] %vm338, %v1051
      %1061 = vst [vmem:[#allocation3 + $0x24] sm:$0xff] %v1053
      %1062 = vst.msk [vmem:[#allocation3 + $0x2c] sm:$0xf] %vm338, %v1054
      %v1063 = vld [vmem:[#allocation2] sm:$0xff]
      %v1064 = vld [vmem:[#allocation2 + $0x8] sm:$0xff]
      %v1065 = vld [vmem:[#allocation2 + $0x14] sm:$0xff]
      %v1066 = vld [vmem:[#allocation2 + $0x1c] sm:$0xff]
      %1071 = vrot.lane.b32.xlu0 %v1063, 17
      %v1072 = vpop.permute.xlu0 %1071
      %1073 = vrot.lane.b32.xlu0 %v1064, 17
      %v1074 = vpop.permute.xlu0 %1073
      %1075 = vrot.lane.b32.xlu0 %v1065, 17
      %v1076 = vpop.permute.xlu0 %1075
      %1077 = vrot.lane.b32.xlu0 %v1066, 17
      %v1078 = vpop.permute.xlu0 %1077
      %v1079 = vrot.slane %v1072, 4
      %v1080 = vrot.slane %v1074, 4
      %v1081 = vrot.slane %v1076, 4
      %v1082 = vrot.slane %v1078, 4
      %v1083 = vsel %vm327, %v1079, %v1080
      %vm1084 = vcmask 138240
      %v1085 = vsel %vm1084, %v1072, %v1083
      %v1086 = vsel %vm1084, %v1074, %v1080
      %v1087 = vsel %vm327, %v1081, %v1082
      %v1088 = vsel %vm1084, %v1076, %v1087
      %v1089 = vsel %vm1084, %v1078, %v1082
      %1094 = vst [vmem:[#allocation3 + $0x30] sm:$0xff] %v1085
      %1095 = vst.msk [vmem:[#allocation3 + $0x38] sm:$0xf] %vm338, %v1086
      %1096 = vst [vmem:[#allocation3 + $0x3c] sm:$0xff] %v1088
      %1097 = vst.msk [vmem:[#allocation3 + $0x44] sm:$0xf] %vm338, %v1089
      %v1098 = vld [vmem:[#allocation2] sm:$0xff]
      %v1099 = vld [vmem:[#allocation2 + $0x8] sm:$0xff]
      %v1100 = vld [vmem:[#allocation2 + $0x14] sm:$0xff]
      %v1101 = vld [vmem:[#allocation2 + $0x1c] sm:$0xff]
      %1106 = vrot.lane.b32.xlu0 %v1098, 1
      %v1107 = vpop.permute.xlu0 %1106
      %1108 = vrot.lane.b32.xlu0 %v1099, 1
      %v1109 = vpop.permute.xlu0 %1108
      %1110 = vrot.lane.b32.xlu0 %v1100, 1
      %v1111 = vpop.permute.xlu0 %1110
      %1112 = vrot.lane.b32.xlu0 %v1101, 1
      %v1113 = vpop.permute.xlu0 %1112
      %v1114 = vrot.slane %v1107, 4
      %v1115 = vrot.slane %v1109, 4
      %v1116 = vrot.slane %v1111, 4
      %v1117 = vrot.slane %v1113, 4
      %v1118 = vsel %vm327, %v1114, %v1115
      %vm1119 = vcmask 7168
      %v1120 = vsel %vm1119, %v1107, %v1118
      %v1121 = vsel %vm1119, %v1109, %v1115
      %v1122 = vsel %vm327, %v1116, %v1117
      %v1123 = vsel %vm1119, %v1111, %v1122
      %v1124 = vsel %vm1119, %v1113, %v1117
      %1129 = vst [vmem:[#allocation3 + $0x48] sm:$0xff] %v1120
      %1130 = vst.msk [vmem:[#allocation3 + $0x50] sm:$0xf] %vm338, %v1121
      %1131 = vst [vmem:[#allocation3 + $0x54] sm:$0xff] %v1123
      %1132 = vst.msk [vmem:[#allocation3 + $0x5c] sm:$0xf] %vm338, %v1124
      %v1133 = vld [vmem:[#allocation2 + $0x4] sm:$0xff]
      %v1134 = vld [vmem:[#allocation2 + $0xc] sm:$0xf]
      %v1135 = vld [vmem:[#allocation2 + $0x18] sm:$0xff]
      %v1136 = vld [vmem:[#allocation2 + $0x20] sm:$0xf]
      %1137 = vst [vmem:[#allocation3 + $0x60] sm:$0xff] %v1133
      %1138 = vst.msk [vmem:[#allocation3 + $0x68] sm:$0xf] %vm338, %v1134
      %1139 = vst [vmem:[#allocation3 + $0x6c] sm:$0xff] %v1135
      %1140 = vst.msk [vmem:[#allocation3 + $0x74] sm:$0xf] %vm338, %v1136
      %v1141 = vld [vmem:[#allocation2 + $0x4] sm:$0xff]
      %v1142 = vld [vmem:[#allocation2 + $0xc] sm:$0xf]
      %v1143 = vld [vmem:[#allocation2 + $0x18] sm:$0xff]
      %v1144 = vld [vmem:[#allocation2 + $0x20] sm:$0xf]
      %1149 = vrot.lane.b32.xlu0 %v1141, 127
      %v1150 = vpop.permute.xlu0 %1149
      %1151 = vrot.lane.b32.xlu0 %v1142, 127
      %v1152 = vpop.permute.xlu0 %1151
      %1153 = vrot.lane.b32.xlu0 %v1143, 127
      %v1154 = vpop.permute.xlu0 %1153
      %1155 = vrot.lane.b32.xlu0 %v1144, 127
      %v1156 = vpop.permute.xlu0 %1155
      %v1157 = vrot.slane %v1150, 4
      %v1158 = vrot.slane %v1152, 4
      %v1159 = vrot.slane %v1154, 4
      %v1160 = vrot.slane %v1156, 4
      %v1161 = vsel %vm327, %v1157, %v1158
      %vm1162 = vcmask 1039360
      %v1163 = vsel %vm1162, %v1150, %v1161
      %v1164 = vsel %vm327, %v1159, %v1160
      %v1165 = vsel %vm1162, %v1154, %v1164
      %1170 = vst [vmem:[#allocation3 + $0x78] sm:$0xff] %v1163
      %1171 = vst.msk [vmem:[#allocation3 + $0x80] sm:$0xf] %vm338, %v1152
      %1172 = vst [vmem:[#allocation3 + $0x84] sm:$0xff] %v1165
      %1173 = vst.msk [vmem:[#allocation3 + $0x8c] sm:$0xf] %vm338, %v1156
      %v1174 = vld [vmem:[#allocation2 + $0x4] sm:$0xff]
      %v1175 = vld [vmem:[#allocation2 + $0xc] sm:$0xf]
      %v1176 = vld [vmem:[#allocation2 + $0x18] sm:$0xff]
      %v1177 = vld [vmem:[#allocation2 + $0x20] sm:$0xf]
      %1182 = vrot.lane.b32.xlu0 %v1174, 111
      %v1183 = vpop.permute.xlu0 %1182
      %1184 = vrot.lane.b32.xlu0 %v1175, 111
      %v1185 = vpop.permute.xlu0 %1184
      %1186 = vrot.lane.b32.xlu0 %v1176, 111
      %v1187 = vpop.permute.xlu0 %1186
      %1188 = vrot.lane.b32.xlu0 %v1177, 111
      %v1189 = vpop.permute.xlu0 %1188
      %v1190 = vrot.slane %v1183, 4
      %v1191 = vrot.slane %v1185, 4
      %v1192 = vrot.slane %v1187, 4
      %v1193 = vrot.slane %v1189, 4
      %v1194 = vsel %vm327, %v1190, %v1191
      %v1195 = vsel %vm329, %v1183, %v1194
      %v1196 = vsel %vm327, %v1192, %v1193
      %v1197 = vsel %vm329, %v1187, %v1196
      %1202 = vst [vmem:[#allocation3 + $0x90] sm:$0xff] %v1195
      %1203 = vst.msk [vmem:[#allocation3 + $0x98] sm:$0xf] %vm338, %v1185
      %1204 = vst [vmem:[#allocation3 + $0x9c] sm:$0xff] %v1197
      %1205 = vst.msk [vmem:[#allocation3 + $0xa4] sm:$0xf] %vm338, %v1189
      %v1206 = vld [vmem:[#allocation2 + $0x4] sm:$0xff]
      %v1207 = vld [vmem:[#allocation2 + $0xc] sm:$0xf]
      %v1208 = vld [vmem:[#allocation2 + $0x18] sm:$0xff]
      %v1209 = vld [vmem:[#allocation2 + $0x20] sm:$0xf]
      %1214 = vrot.lane.b32.xlu0 %v1206, 110
      %v1215 = vpop.permute.xlu0 %1214
      %1216 = vrot.lane.b32.xlu0 %v1207, 110
      %v1217 = vpop.permute.xlu0 %1216
      %1218 = vrot.lane.b32.xlu0 %v1208, 110
      %v1219 = vpop.permute.xlu0 %1218
      %1220 = vrot.lane.b32.xlu0 %v1209, 110
      %v1221 = vpop.permute.xlu0 %1220
      %v1222 = vrot.slane %v1215, 4
      %v1223 = vrot.slane %v1217, 4
      %v1224 = vrot.slane %v1219, 4
      %v1225 = vrot.slane %v1221, 4
      %v1226 = vsel %vm327, %v1222, %v1223
      %v1227 = vsel %vm363, %v1215, %v1226
      %v1228 = vsel %vm327, %v1224, %v1225
      %v1229 = vsel %vm363, %v1219, %v1228
      %1234 = vst [vmem:[#allocation3 + $0xa8] sm:$0xff] %v1227
      %1235 = vst.msk [vmem:[#allocation3 + $0xb0] sm:$0xf] %vm338, %v1217
      %1236 = vst [vmem:[#allocation3 + $0xb4] sm:$0xff] %v1229
      %1237 = vst.msk [vmem:[#allocation3 + $0xbc] sm:$0xf] %vm338, %v1221
      %v1238 = vld [vmem:[#allocation2 + $0x4] sm:$0xff]
      %v1239 = vld [vmem:[#allocation2 + $0xc] sm:$0xf]
      %v1240 = vld [vmem:[#allocation2 + $0x18] sm:$0xff]
      %v1241 = vld [vmem:[#allocation2 + $0x20] sm:$0xf]
      %1246 = vrot.lane.b32.xlu0 %v1238, 109
      %v1247 = vpop.permute.xlu0 %1246
      %1248 = vrot.lane.b32.xlu0 %v1239, 109
      %v1249 = vpop.permute.xlu0 %1248
      %1250 = vrot.lane.b32.xlu0 %v1240, 109
      %v1251 = vpop.permute.xlu0 %1250
      %1252 = vrot.lane.b32.xlu0 %v1241, 109
      %v1253 = vpop.permute.xlu0 %1252
      %v1254 = vrot.slane %v1247, 4
      %v1255 = vrot.slane %v1249, 4
      %v1256 = vrot.slane %v1251, 4
      %v1257 = vrot.slane %v1253, 4
      %v1258 = vsel %vm327, %v1254, %v1255
      %v1259 = vsel %vm396, %v1247, %v1258
      %v1260 = vsel %vm327, %v1256, %v1257
      %v1261 = vsel %vm396, %v1251, %v1260
      %1266 = vst [vmem:[#allocation3 + $0xc0] sm:$0xff] %v1259
      %1267 = vst.msk [vmem:[#allocation3 + $0xc8] sm:$0xf] %vm338, %v1249
      %1268 = vst [vmem:[#allocation3 + $0xcc] sm:$0xff] %v1261
      %1269 = vst.msk [vmem:[#allocation3 + $0xd4] sm:$0xf] %vm338, %v1253
      %v1270 = vld [vmem:[%s2] sm:$0xff]
      %v1271 = vld [vmem:[#allocation3] sm:$0xff]
      %v1272 = vld [vmem:[#allocation3 + $0x8] sm:$0xf]
      %v1273 = vld [vmem:[#allocation3 + $0xc] sm:$0xff]
      %v1274 = vld [vmem:[#allocation3 + $0x14] sm:$0xf]
      %v1275 = vld [vmem:[#allocation3 + $0x18] sm:$0xff]
      %v1276 = vld [vmem:[#allocation3 + $0x20] sm:$0xf]
      %v1277 = vld [vmem:[#allocation3 + $0x24] sm:$0xff]
      %v1278 = vld [vmem:[#allocation3 + $0x2c] sm:$0xf]
      %v1279 = vld [vmem:[#allocation3 + $0x30] sm:$0xff]
      %v1280 = vld [vmem:[#allocation3 + $0x38] sm:$0xf]
      %v1281 = vld [vmem:[#allocation3 + $0x3c] sm:$0xff]
      %v1282 = vld [vmem:[#allocation3 + $0x44] sm:$0xf]
      %v1283 = vld [vmem:[#allocation3 + $0x48] sm:$0xff]
      %v1284 = vld [vmem:[#allocation3 + $0x50] sm:$0xf]
      %v1285 = vld [vmem:[#allocation3 + $0x54] sm:$0xff]
      %v1286 = vld [vmem:[#allocation3 + $0x5c] sm:$0xf]
      %v1287 = vld [vmem:[#allocation3 + $0x60] sm:$0xff]
      %v1288 = vld [vmem:[#allocation3 + $0x68] sm:$0xf]
      %v1289 = vld [vmem:[#allocation3 + $0x6c] sm:$0xff]
      %v1290 = vld [vmem:[#allocation3 + $0x74] sm:$0xf]
      %v1291 = vld [vmem:[#allocation3 + $0x78] sm:$0xff]
      %v1292 = vld [vmem:[#allocation3 + $0x80] sm:$0xf]
      %v1293 = vld [vmem:[#allocation3 + $0x84] sm:$0xff]
      %v1294 = vld [vmem:[#allocation3 + $0x8c] sm:$0xf]
      %v1295 = vld [vmem:[#allocation3 + $0x90] sm:$0xff]
      %v1296 = vld [vmem:[#allocation3 + $0x98] sm:$0xf]
      %v1297 = vld [vmem:[#allocation3 + $0x9c] sm:$0xff]
      %v1298 = vld [vmem:[#allocation3 + $0xa4] sm:$0xf]
      %v1299 = vld [vmem:[#allocation3 + $0xa8] sm:$0xff]
      %v1300 = vld [vmem:[#allocation3 + $0xb0] sm:$0xf]
      %v1301 = vld [vmem:[#allocation3 + $0xb4] sm:$0xff]
      %v1302 = vld [vmem:[#allocation3 + $0xbc] sm:$0xf]
      %v1303 = vld [vmem:[#allocation3 + $0xc0] sm:$0xff]
      %v1304 = vld [vmem:[#allocation3 + $0xc8] sm:$0xf]
      %v1305 = vld [vmem:[#allocation3 + $0xcc] sm:$0xff]
      %v1306 = vld [vmem:[#allocation3 + $0xd4] sm:$0xf]
      %v1308 = vunpack.c.l.b16 %v1270
      %v1309 = vunpack.c.h.b16 %v1270
      %v1310 = vpack.c.b16 %v1308, %v1308
      %v1311 = vpack.c.b16 %v1309, %v1309
      %v1349 = vunpack.c.l.b16 %v1271
      %v1350 = vunpack.c.h.b16 %v1271
      %v1351 = vunpack.c.l.b16 %v1272
      %v1352 = vunpack.c.l.b16 %v1273
      %v1353 = vunpack.c.h.b16 %v1273
      %v1354 = vunpack.c.l.b16 %v1274
      %v1355 = vunpack.c.l.b16 %v1275
      %v1356 = vunpack.c.h.b16 %v1275
      %v1357 = vunpack.c.l.b16 %v1276
      %v1358 = vunpack.c.l.b16 %v1277
      %v1359 = vunpack.c.h.b16 %v1277
      %v1360 = vunpack.c.l.b16 %v1278
      %v1361 = vunpack.c.l.b16 %v1279
      %v1362 = vunpack.c.h.b16 %v1279
      %v1363 = vunpack.c.l.b16 %v1280
      %v1364 = vunpack.c.l.b16 %v1281
      %v1365 = vunpack.c.h.b16 %v1281
      %v1366 = vunpack.c.l.b16 %v1282
      %v1367 = vunpack.c.l.b16 %v1283
      %v1368 = vunpack.c.h.b16 %v1283
      %v1369 = vunpack.c.l.b16 %v1284
      %v1370 = vunpack.c.l.b16 %v1285
      %v1371 = vunpack.c.h.b16 %v1285
      %v1372 = vunpack.c.l.b16 %v1286
      %v1373 = vunpack.c.l.b16 %v1287
      %v1374 = vunpack.c.h.b16 %v1287
      %v1375 = vunpack.c.l.b16 %v1288
      %v1376 = vunpack.c.l.b16 %v1289
      %v1377 = vunpack.c.h.b16 %v1289
      %v1378 = vunpack.c.l.b16 %v1290
      %v1379 = vunpack.c.l.b16 %v1291
      %v1380 = vunpack.c.h.b16 %v1291
      %v1381 = vunpack.c.l.b16 %v1292
      %v1382 = vunpack.c.l.b16 %v1293
      %v1383 = vunpack.c.h.b16 %v1293
      %v1384 = vunpack.c.l.b16 %v1294
      %v1385 = vunpack.c.l.b16 %v1295
      %v1386 = vunpack.c.h.b16 %v1295
      %v1387 = vunpack.c.l.b16 %v1296
      %v1388 = vunpack.c.l.b16 %v1297
      %v1389 = vunpack.c.h.b16 %v1297
      %v1390 = vunpack.c.l.b16 %v1298
      %v1391 = vunpack.c.l.b16 %v1299
      %v1392 = vunpack.c.h.b16 %v1299
      %v1393 = vunpack.c.l.b16 %v1300
      %v1394 = vunpack.c.l.b16 %v1301
      %v1395 = vunpack.c.h.b16 %v1301
      %v1396 = vunpack.c.l.b16 %v1302
      %v1397 = vunpack.c.l.b16 %v1303
      %v1398 = vunpack.c.h.b16 %v1303
      %v1399 = vunpack.c.l.b16 %v1304
      %v1400 = vunpack.c.l.b16 %v1305
      %v1401 = vunpack.c.h.b16 %v1305
      %v1402 = vunpack.c.l.b16 %v1306
      %v1403 = vpack.c.b16 %v1352, %v1349
      %v1404 = vpack.c.b16 %v1353, %v1350
      %v1405 = vpack.c.b16 %v1354, %v1351
      %v1406 = vpack.c.b16 %v1358, %v1355
      %v1407 = vpack.c.b16 %v1359, %v1356
      %v1408 = vpack.c.b16 %v1360, %v1357
      %v1409 = vpack.c.b16 %v1364, %v1361
      %v1410 = vpack.c.b16 %v1365, %v1362
      %v1411 = vpack.c.b16 %v1366, %v1363
      %v1412 = vpack.c.b16 %v1370, %v1367
      %v1413 = vpack.c.b16 %v1371, %v1368
      %v1414 = vpack.c.b16 %v1372, %v1369
      %v1415 = vpack.c.b16 %v1376, %v1373
      %v1416 = vpack.c.b16 %v1377, %v1374
      %v1417 = vpack.c.b16 %v1378, %v1375
      %v1418 = vpack.c.b16 %v1382, %v1379
      %v1419 = vpack.c.b16 %v1383, %v1380
      %v1420 = vpack.c.b16 %v1384, %v1381
      %v1421 = vpack.c.b16 %v1388, %v1385
      %v1422 = vpack.c.b16 %v1389, %v1386
      %v1423 = vpack.c.b16 %v1390, %v1387
      %v1424 = vpack.c.b16 %v1394, %v1391
      %v1425 = vpack.c.b16 %v1395, %v1392
      %v1426 = vpack.c.b16 %v1396, %v1393
      %v1427 = vpack.c.b16 %v1400, %v1397
      %v1428 = vpack.c.b16 %v1401, %v1398
      %v1429 = vpack.c.b16 %v1402, %v1399
      %v1458 = vsel %vm797, %v1311, 0
      %1460 = vmatprep.subr.bf16.mxu0 %v1425
      %1461 = vmatpush1.bf16.msra.mxu0 %v1424
      %1462 = vmatprep.subr.bf16.mxu0 %v1422
      %1463 = vmatpush1.bf16.msra.mxu0 %v1421
      %1464 = vmatprep.subr.bf16.mxu0 %v1419
      %1465 = vmatpush1.bf16.msra.mxu0 %v1418
      %1466 = vmatprep.subr.bf16.mxu0 %v1416
      %1467 = vmatpush1.bf16.msra.mxu0 %v1415
      %1468 = vmatprep.subr.bf16.mxu0 %v1413
      %1469 = vmatpush1.bf16.msra.mxu0 %v1412
      %1470 = vmatprep.subr.bf16.mxu0 %v1410
      %1471 = vmatpush1.bf16.msra.mxu0 %v1409
      %1472 = vmatprep.subr.bf16.mxu0 %v1407
      %1473 = vmatpush1.bf16.msra.mxu0 %v1406
      %1474 = vmatprep.subr.bf16.mxu0 %v1404
      %1475 = vmatpush1.bf16.msra.mxu0 %v1403
      %1476 = vmatprep.subr.bf16.mxu0 0
      %1477 = vmatpush2.bf16.msra.mxu0 0
      %1478 = vmatprep.subr.bf16.mxu0 0
      %1479 = vmatpush2.bf16.msra.mxu0 0
      %1480 = vmatprep.subr.bf16.mxu0 0
      %1481 = vmatpush2.bf16.msra.mxu0 0
      %1482 = vmatprep.subr.bf16.mxu0 0
      %1483 = vmatpush2.bf16.msra.mxu0 0
      %1484 = vmatprep.subr.bf16.mxu0 0
      %1485 = vmatpush2.bf16.msra.mxu0 0
      %1486 = vmatprep.subr.bf16.mxu0 0
      %1487 = vmatpush2.bf16.msra.mxu0 0
      %1488 = vmatprep.subr.bf16.mxu0 0
      %1489 = vmatpush2.bf16.msra.mxu0 0
      %1490 = vmatprep.subr.bf16.mxu0 %v1428
      %1491 = vmatpush2.bf16.msra.mxu0 %v1427
      %1492 = vmatprep.mubr.bf16.mxu0 %v1458
      %1493 = vmatmul.mubr.bf16.gmra.mxu0 %v1310
      %v1494 = vpop.f32.mrf.mxu0
      %v1495 = vadd.f32 0.0, %v1494
      %v1496 = vpop.f32.mrf.mxu0
      %v1497 = vadd.f32 0.0, %v1496
      %v1498 = vpop.f32.mrf.mxu0
      %v1499 = vpop.f32.mrf.mxu0
      %1500 = vdwg.mxu0
      %1501 = vmatprep.subr.bf16.mxu0 0
      %1502 = vmatpush1.bf16.msra.mxu0 %v1426
      %1503 = vmatprep.subr.bf16.mxu0 0
      %1504 = vmatpush1.bf16.msra.mxu0 %v1423
      %1505 = vmatprep.subr.bf16.mxu0 0
      %1506 = vmatpush1.bf16.msra.mxu0 %v1420
      %1507 = vmatprep.subr.bf16.mxu0 0
      %1508 = vmatpush1.bf16.msra.mxu0 %v1417
      %1509 = vmatprep.subr.bf16.mxu0 0
      %1510 = vmatpush1.bf16.msra.mxu0 %v1414
      %1511 = vmatprep.subr.bf16.mxu0 0
      %1512 = vmatpush1.bf16.msra.mxu0 %v1411
      %1513 = vmatprep.subr.bf16.mxu0 0
      %1514 = vmatpush1.bf16.msra.mxu0 %v1408
      %1515 = vmatprep.subr.bf16.mxu0 0
      %1516 = vmatpush1.bf16.msra.mxu0 %v1405
      %1517 = vmatprep.subr.bf16.mxu0 0
      %1518 = vmatpush2.bf16.msra.mxu0 0
      %1519 = vmatprep.subr.bf16.mxu0 0
      %1520 = vmatpush2.bf16.msra.mxu0 0
      %1521 = vmatprep.subr.bf16.mxu0 0
      %1522 = vmatpush2.bf16.msra.mxu0 0
      %1523 = vmatprep.subr.bf16.mxu0 0
      %1524 = vmatpush2.bf16.msra.mxu0 0
      %1525 = vmatprep.subr.bf16.mxu0 0
      %1526 = vmatpush2.bf16.msra.mxu0 0
      %1527 = vmatprep.subr.bf16.mxu0 0
      %1528 = vmatpush2.bf16.msra.mxu0 0
      %1529 = vmatprep.subr.bf16.mxu0 0
      %1530 = vmatpush2.bf16.msra.mxu0 0
      %1531 = vmatprep.subr.bf16.mxu0 0
      %1532 = vmatpush2.bf16.msra.mxu0 %v1429
      %1533 = vmatprep.mubr.bf16.mxu0 %v1458
      %1534 = vmatmul.mubr.bf16.gmra.mxu0 %v1310
      %v1535 = vpop.f32.mrf.mxu0
      %v1536 = vadd.f32 0.0, %v1535
      %v1537 = vpop.f32.mrf.mxu0
      %v1538 = vpop.f32.mrf.mxu0
      %v1539 = vpop.f32.mrf.mxu0
      %1540 = vdwg.mxu0
      %v1541 = vld [vmem:[%s5] sm:$0xff]
      %1543 = vset.pattern.permute.xlu0 0
      %1544 = vperm.xlu0 %1543, %v1541
      %v1545 = vpop.permute.xlu0 %1544
      %v1547 = vmul.f32 %v1495, %v1545
      %v1548 = vmul.f32 %v1497, %v1545
      %v1549 = vmul.f32 %v1536, %v1545
      %v1550 = vld [vmem:[%s6] sm:$0xff]
      %1552 = vset.pattern.permute.xlu0 0
      %1553 = vperm.xlu0 %1552, %v1550
      %v1554 = vpop.permute.xlu0 %1553
      %v1556 = vadd.f32 %v1547, %v1554
      %v1557 = vadd.f32 %v1548, %v1554
      %v1558 = vadd.f32 %v1549, %v1554
      %vm1559 = vcmp.ge.f32.partialorder %v1556, 0.0
      %vm1560 = vcmp.ge.f32.partialorder %v1557, 0.0
      %vm1561 = vcmp.ge.f32.partialorder %v1558, 0.0
      %v1562 = vmul.f32 %v1556, 0.01
      %v1563 = vmul.f32 %v1557, 0.01
      %v1564 = vmul.f32 %v1558, 0.01
      %v1565 = vsel %vm1559, %v1556, %v1562
      %v1566 = vsel %vm1560, %v1557, %v1563
      %v1567 = vsel %vm1561, %v1558, %v1564
      %1571 = vrot.lane.b32.xlu0 %v1565, 110
      %v1572 = vpop.permute.xlu0 %1571
      %1573 = vrot.lane.b32.xlu0 %v1566, 110
      %v1574 = vpop.permute.xlu0 %1573
      %1575 = vrot.lane.b32.xlu0 %v1567, 110
      %v1576 = vpop.permute.xlu0 %1575
      %vm1577 = vcmask 900096
      %v1578 = vsel %vm1577, %v1572, %v1574
      %v1579 = vsel %vm1577, %v1574, %v1576
      %1583 = vst [vmem:[%s305] sm:$0xff] %v1578
      %1584 = vst [vmem:[%s305 + $0x8] sm:$0xff] %v1579
      %vm1585 = vcmask 261120
      %1586 = vst.msk [vmem:[%s305 + $0x10] sm:$0xff] %vm1585, %v1576
      %p1587 = scmp.lt.s32.totalorder %s19, 1
      %s1588 = scalar_select %p1587, %s19, 1
      %s1589 = smul.addr %s1588, 3
      %s1590 = smul.addr %s1589, 8
      %s1591 = scalar_lea.vmem %s8, %s1590
      // Predicated region
      $region53: #{conv_block_forward.1} parent=51 // pred_check
        %p1592 = pneg %p210
      $region54: #{conv_block_forward.1} parent=51 // pred_check_branch
        %1594 = sbr.rel (%p1592) target = $region56
      $region55: #{conv_block_forward.1} parent=51 // pred_region
        _
      $region56: #{conv_block_forward.1} parent=51 // pred_fallthru
        _
    $region52: #{conv_block_forward.1} parent=5 // pred_fallthru
      _
    %p1595 = scmp.le.s32.totalorder 2, %s14
    // Predicated region
    $region57: #{conv_block_forward.1} parent=5 // pred_check
      %p1596 = pneg %p1595
    $region58: #{conv_block_forward.1} parent=5 // pred_check_branch
      %1598 = sbr.rel (%p1596) target = $region60
    $region59: #{conv_block_forward.1} parent=5 // pred_region
      %s1599 = ssub.s32 %s14, 2
      // Predicated region
      $region61: #{conv_block_forward.1} parent=59 // pred_check
        %p1600 = pneg %p216
      $region62: #{conv_block_forward.1} parent=59 // pred_check_branch
        %1602 = sbr.rel (%p1600) target = $region64
      $region63: #{conv_block_forward.1} parent=59 // pred_region
        %p1603 = scmp.lt.s32.totalorder %s20, 1
        %s1604 = scalar_select %p1603, %s20, 1
        %s1605 = smul.addr %s1604, 3
        %s1606 = smul.addr %s1605, 8
        %s1607 = scalar_lea.vmem %s8, %s1606
      $region64: #{conv_block_forward.1} parent=59 // pred_fallthru
        _
    $region60: #{conv_block_forward.1} parent=5 // pred_fallthru
      _
  $region6: #{conv_block_forward.1} parent=0 // loop_footer
    %s18 = sadd.s32 1, %s14
  $region7: #{conv_block_forward.1} parent=0 // loop_footer_branch
    %13 = sbr.rel target = $region3
  $region8: #{conv_block_forward.1} parent=0 // loop_exit
    _

</llo_original>
